<compile_context>
chip_gen: v5e
topology: v5e:2x2
jax: 0.10.0
libtpu: 0.0.40
codegen_flags: <defaults>
</compile_context>

<pallas_src>
import functools
import math

import jax
import jax.numpy as jnp
from jax.experimental import pallas as pl
from jax.experimental.pallas import tpu as pltpu


# Column order of the two packed parameter slabs.
_W_SLAB_ORDER = ("w_qkv_s", "w_o_s", "w_qkv_c", "w_o_c", "w_ff1", "w_ff2", "w_out1")
_B_SLAB_ORDER = ("b_in", "b_qkv_s", "b_o_s", "b_qkv_c", "b_o_c",
                 "g1", "be1", "g2", "be2", "g3", "be3",
                 "b_ff1", "b_ff2", "b_out1", "b_out2")


def pack_params(params):
    """One-time preprocessing: pack weights/biases into dense slabs."""
    d_model = params["w_in"].shape[1]
    # nn.TransformerDecoderLayer here has dim_feedforward == d_model (output_layers[0]).
    assert params["w_ff2"].shape[0] == d_model, "dim_feedforward must equal d_model"
    w_slab = jnp.concatenate([params[k] for k in _W_SLAB_ORDER], axis=1)      # (D, 10D+H)
    b_slab = jnp.concatenate([params[k].reshape(1, -1) for k in _B_SLAB_ORDER],
                             axis=1)                                           # (1, 17D+H+Dout)
    w_off, off = {}, 0
    for k in _W_SLAB_ORDER:
        n = params[k].shape[1]
        w_off[k] = (off, n)
        off += n
    b_off, off = {}, 0
    for k in _B_SLAB_ORDER:
        n = params[k].shape[-1]
        b_off[k] = (off, n)
        off += n
    return dict(pos=params["pos"], w_in=params["w_in"], w_slab=w_slab,
                w_out2=params["w_out2"], b_slab=b_slab,
                w_off=w_off, b_off=b_off,
                d_model=d_model, d_out=params["w_out2"].shape[1])


def _transformer_kernel(x_ref, pos_ref, w_in_ref, w_ref, w_out2_ref, b_ref, o_ref,
                        *, nhead, d_model, w_off, b_off, last_only):
    f32 = jnp.float32
    Bb, S, Din = x_ref.shape
    D = d_model
    dk = D // nhead
    R = Bb * S

    def wcol(name):
        o, n = w_off[name]
        return w_ref[:, o:o + n]

    def bias(name):
        o, n = b_off[name]
        return b_ref[:, o:o + n]

    def dot(a, b):
        return jnp.dot(a, b, preferred_element_type=f32)

    def layer_norm(h, g, b):            # PyTorch LayerNorm, eps=1e-5, biased variance
        mu = jnp.mean(h, axis=-1, keepdims=True)
        var = jnp.mean(jnp.square(h - mu), axis=-1, keepdims=True)
        return (h - mu) * jax.lax.rsqrt(var + 1e-5) * g + b

    def to_heads(t):                    # (R, D) -> (nhead*Bb, S, dk); contiguous reshapes
        th = jnp.stack([t[:, h * dk:(h + 1) * dk] for h in range(nhead)], axis=0)
        return th.reshape(nhead * Bb, S, dk)

    def from_heads(t):                  # (nhead*Bb, S, dk) -> (R, D)
        th = t.reshape(nhead, R, dk)
        return jnp.concatenate([th[h] for h in range(nhead)], axis=-1)

    def attention(q, k, v, w_o, b_o, mask):
        qh = to_heads(q * (1.0 / math.sqrt(dk)))     # scale folded into q
        kh = to_heads(k)
        vh = to_heads(v)
        s = jnp.einsum("xqd,xkd->xqk", qh, kh, preferred_element_type=f32)
        if mask is not None:
            s = s + mask[None]
        m = jnp.max(s, axis=-1, keepdims=True)
        e = jnp.exp(s - m)
        p = e * pl.reciprocal(jnp.sum(e, axis=-1, keepdims=True), approx=True)
        ctx = jnp.einsum("xqk,xkd->xqd", p, vh, preferred_element_type=f32)
        return dot(from_heads(ctx), w_o) + b_o        # one dense (R,D)x(D,D) out-proj

    # causal additive mask (0 on/below diag, -inf above); once per grid step
    row = jax.lax.broadcasted_iota(jnp.int32, (S, S), 0)
    col = jax.lax.broadcasted_iota(jnp.int32, (S, S), 1)
    causal = jnp.where(col <= row, 0.0, -1e30).astype(f32)

    # input MLP ([Din, d_model]) + positional embedding, on all Bb*S rows at once
    x_flat = x_ref[...].astype(f32).reshape(R, Din)
    enc = dot(x_flat, w_in_ref[...]) + bias("b_in")
    enc = (enc.reshape(Bb, S, D) + pos_ref[...][None]).reshape(R, D)

    # --- nn.TransformerDecoderLayer (norm_first=False, relu, eval-mode dropout) ---
    # self-attention: packed QKV projection, head+batch batched attention
    qkv = dot(enc, wcol("w_qkv_s")) + bias("b_qkv_s")
    sa = attention(qkv[:, 0:D], qkv[:, D:2 * D], qkv[:, 2 * D:3 * D],
                   wcol("w_o_s"), bias("b_o_s"), causal)
    y1 = layer_norm(enc + sa, bias("g1"), bias("be1"))

    # cross-attention: queries from y1, keys/values from memory (== enc_x)
    w_c = wcol("w_qkv_c")
    b_c = bias("b_qkv_c")
    q_c = dot(y1, w_c[:, 0:D]) + b_c[:, 0:D]
    k_c = dot(enc, w_c[:, D:2 * D]) + b_c[:, D:2 * D]
    v_c = dot(enc, w_c[:, 2 * D:3 * D]) + b_c[:, 2 * D:3 * D]
    ca = attention(q_c, k_c, v_c, wcol("w_o_c"), bias("b_o_c"), None)
    y2 = layer_norm(y1 + ca, bias("g2"), bias("be2"))

    # feed-forward
    ff = dot(jnp.maximum(dot(y2, wcol("w_ff1")) + bias("b_ff1"), 0.0),
             wcol("w_ff2")) + bias("b_ff2")
    y3 = layer_norm(y2 + ff, bias("g3"), bias("be3"))

    # output MLP ([d_model, H, 'ReLU', Dout]); last row only for the default path
    if last_only:
        y3 = y3.reshape(Bb, S, D)[:, S - 1, :]                    # (Bb, D)
    h = jnp.maximum(dot(y3, wcol("w_out1")) + bias("b_out1"), 0.0)
    out = dot(h, w_out2_ref[...]) + bias("b_out2")
    if last_only:
        o_ref[...] = out[:, None, :].astype(o_ref.dtype)          # (Bb, 1, Dout)
    else:
        o_ref[...] = out.reshape(Bb, S, -1).astype(o_ref.dtype)   # (Bb, S, Dout)


def transformer_forward(x, packed, *, nhead, all_actions=False):
    """Pallas forward of TransfomerNetwork. x: (B, S, Din) or (S, Din)."""
    if x.ndim == 2:                      # glue: x.unsqueeze(0)
        x = x[None]
    B, S, Din = x.shape
    D = packed["d_model"]
    Dout = packed["d_out"]
    assert D % nhead == 0

    # >=2 "parallel" grid steps so both v7x TensorCores get work; each step
    # processes Bb batch elements (Bb*S rows) to amortise per-step overhead.
    nsteps = 2 if (B % 2 == 0 and B >= 2) else 1
    Bb = B // nsteps

    pos_s = packed["pos"][:S]            # glue: positional_embedding[:, :S, :]
    args = (x, pos_s, packed["w_in"], packed["w_slab"], packed["w_out2"],
            packed["b_slab"])

    def const_spec(a):                   # whole array, VMEM-resident across grid steps
        return pl.BlockSpec(a.shape, lambda i, _n=a.ndim: (0,) * _n)

    in_specs = [pl.BlockSpec((Bb, S, Din), lambda i: (i, 0, 0))]
    in_specs += [const_spec(a) for a in args[1:]]

    if all_actions:
        out_shape = jax.ShapeDtypeStruct((B, S, Dout), x.dtype)
        out_spec = pl.BlockSpec((Bb, S, Dout), lambda i: (i, 0, 0))
    else:
        # only the last-position action row per batch element ever leaves VMEM
        out_shape = jax.ShapeDtypeStruct((B, 1, Dout), x.dtype)
        out_spec = pl.BlockSpec((Bb, 1, Dout), lambda i: (i, 0, 0))

    kernel = functools.partial(
        _transformer_kernel, nhead=nhead, d_model=D,
        w_off=packed["w_off"], b_off=packed["b_off"], last_only=not all_actions)

    out = pl.pallas_call(
        kernel,
        out_shape=out_shape,
        grid_spec=pltpu.PrefetchScalarGridSpec(
            num_scalar_prefetch=0,
            grid=(nsteps,),
            in_specs=in_specs,
            out_specs=out_spec),
        compiler_params=pltpu.CompilerParams(
            dimension_semantics=("parallel",),
            vmem_limit_bytes=32 * 1024 * 1024),
    )(*args)

    return out if all_actions else out[:, 0, :]


# ----------------------------- pure-JAX reference -----------------------------

def reference_forward(x, params, *, nhead, all_actions=False):
    if x.ndim == 2:
        x = x[None]
    B, S, Din = x.shape
    D = params["w_in"].shape[1]
    dk = D // nhead
    hp = jax.lax.Precision.HIGHEST
    dot = lambda a, b: jnp.einsum("bsi,io->bso", a, b, precision=hp)

    def layer_norm(h, g, b):
        mu = jnp.mean(h, axis=-1, keepdims=True)
        var = jnp.mean(jnp.square(h - mu), axis=-1, keepdims=True)
        return (h - mu) * jax.lax.rsqrt(var + 1e-5) * g + b

    def mha(q_src, kv_src, w_qkv, b_qkv, w_o, b_o, mask):
        q = dot(q_src, w_qkv[:, :D]) + b_qkv[:, :D]
        k = dot(kv_src, w_qkv[:, D:2 * D]) + b_qkv[:, D:2 * D]
        v = dot(kv_src, w_qkv[:, 2 * D:]) + b_qkv[:, 2 * D:]
        q = q.reshape(B, S, nhead, dk)
        k = k.reshape(B, S, nhead, dk)
        v = v.reshape(B, S, nhead, dk)
        s = jnp.einsum("bqhd,bkhd->bhqk", q, k, precision=hp) / math.sqrt(dk)
        if mask is not None:
            s = s + mask[None, None]
        p = jax.nn.softmax(s, axis=-1)
        ctx = jnp.einsum("bhqk,bkhd->bqhd", p, v, precision=hp).reshape(B, S, D)
        return dot(ctx, w_o) + b_o

    enc = dot(x, params["w_in"]) + params["b_in"] + params["pos"][None, :S, :]
    i = jnp.arange(S)[:, None]
    j = jnp.arange(S)[None, :]
    causal = jnp.where(j <= i, 0.0, -1e30).astype(jnp.float32)

    sa = mha(enc, enc, params["w_qkv_s"], params["b_qkv_s"],
             params["w_o_s"], params["b_o_s"], causal)
    y1 = layer_norm(enc + sa, params["g1"], params["be1"])
    ca = mha(y1, enc, params["w_qkv_c"], params["b_qkv_c"],
             params["w_o_c"], params["b_o_c"], None)
    y2 = layer_norm(y1 + ca, params["g2"], params["be2"])
    ff = dot(jnp.maximum(dot(y2, params["w_ff1"]) + params["b_ff1"], 0.0),
             params["w_ff2"]) + params["b_ff2"]
    y3 = layer_norm(y2 + ff, params["g3"], params["be3"])
    h = jnp.maximum(dot(y3, params["w_out1"]) + params["b_out1"], 0.0)
    out = dot(h, params["w_out2"]) + params["b_out2"]
    return out if all_actions else out[:, -1, :]


# ----------------------------- parameter init -----------------------------

def init_params(key, *, din, d_model, dff, h_out, dout, context_len):
    def linear(k, fi, fo):
        kw, kb = jax.random.split(k)
        bound = math.sqrt(6.0 / (fi + fo))            # xavier_uniform_ (spec)
        w = jax.random.uniform(kw, (fi, fo), jnp.float32, -bound, bound)
        bb = 1.0 / math.sqrt(fi)
        b = jax.random.uniform(kb, (1, fo), jnp.float32, -bb, bb)
        return w, b

    ks = jax.random.split(key, 10)
    p = {}
    p["pos"] = jax.random.normal(ks[0], (context_len, d_model), jnp.float32) / 1000.0
    p["w_in"], p["b_in"] = linear(ks[1], din, d_model)
    p["w_qkv_s"], p["b_qkv_s"] = linear(ks[2], d_model, 3 * d_model)
    p["w_o_s"], p["b_o_s"] = linear(ks[3], d_model, d_model)
    p["w_qkv_c"], p["b_qkv_c"] = linear(ks[4], d_model, 3 * d_model)
    p["w_o_c"], p["b_o_c"] = linear(ks[5], d_model, d_model)
    for n in ("1", "2", "3"):
        p["g" + n] = jnp.ones((1, d_model), jnp.float32)
        p["be" + n] = jnp.zeros((1, d_model), jnp.float32)
    p["w_ff1"], p["b_ff1"] = linear(ks[6], d_model, dff)
    p["w_ff2"], p["b_ff2"] = linear(ks[7], dff, d_model)
    p["w_out1"], p["b_out1"] = linear(ks[8], d_model, h_out)
    p["w_out2"], p["b_out2"] = linear(ks[9], h_out, dout)
    return p


if __name__ == "__main__":
    # config = {'input_layers': [16, 32], 'output_layers': [32, 64, 'ReLU', 8],
    #           'nhead': 4, 'dropout': 0.0, 'context_len': 8}
    # B=4 so the grid runs 2 parallel steps x 2 batch elements per step.
    B, S, DIN, DMODEL, NHEAD, HOUT, DOUT = 4, 8, 16, 32, 4, 64, 8
    DFF = DMODEL                                       # dim_feedforward = output_layers[0]

    key = jax.random.PRNGKey(0)
    k_x, k_p = jax.random.split(key)
    x = jax.random.normal(k_x, (B, S, DIN), jnp.float32)
    params = init_params(k_p, din=DIN, d_model=DMODEL, dff=DFF,
                         h_out=HOUT, dout=DOUT, context_len=S)
    packed = pack_params(params)                       # one-time param packing

    # all_actions=True path (full sequence of actions)
    actions_all = jax.block_until_ready(
        transformer_forward(x, packed, nhead=NHEAD, all_actions=True))
    ref_all = reference_forward(x, params, nhead=NHEAD, all_actions=True)
    assert actions_all.shape == (B, S, DOUT)
    err_all = float(jnp.max(jnp.abs(actions_all - ref_all)))
    assert jnp.allclose(actions_all, ref_all, atol=2e-3, rtol=2e-3), err_all

    # default path: last-position actions only, computed in-kernel
    actions_last = jax.block_until_ready(
        transformer_forward(x, packed, nhead=NHEAD, all_actions=False))
    ref_last = reference_forward(x, params, nhead=NHEAD, all_actions=False)
    assert actions_last.shape == (B, DOUT)
    err_last = float(jnp.max(jnp.abs(actions_last - ref_last)))
    assert jnp.allclose(actions_last, ref_last, atol=2e-3, rtol=2e-3), err_last

    print("KERNEL_OK")
</pallas_src>

<mosaic_0001>
module attributes {stable_mosaic.version = 11 : i64} {
  func.func @_transformer_kernel(%arg0: i32, %arg1: memref<2x8x16xf32, #tpu.memory_space<vmem>>, %arg2: memref<8x32xf32, #tpu.memory_space<vmem>>, %arg3: memref<16x32xf32, #tpu.memory_space<vmem>>, %arg4: memref<32x384xf32, #tpu.memory_space<vmem>>, %arg5: memref<64x8xf32, #tpu.memory_space<vmem>>, %arg6: memref<1x616xf32, #tpu.memory_space<vmem>>, %arg7: memref<2x8x8xf32, #tpu.memory_space<vmem>>) attributes {dimension_semantics = [#tpu.dimension_semantics<parallel>], iteration_bounds = array<i64: 2>, scalar_prefetch = 0 : i64, scratch_operands = 0 : i64, tpu.core_type = #tpu.core_type<tc>, window_params = [{transform_indices = @transform_0, window_bounds = array<i64: 2, 8, 16>}, {pipeline_mode = #tpu.pipeline_mode<synchronous>, transform_indices = @transform_1, window_bounds = array<i64: 8, 32>}, {pipeline_mode = #tpu.pipeline_mode<synchronous>, transform_indices = @transform_2, window_bounds = array<i64: 16, 32>}, {pipeline_mode = #tpu.pipeline_mode<synchronous>, transform_indices = @transform_3, window_bounds = array<i64: 32, 384>}, {pipeline_mode = #tpu.pipeline_mode<synchronous>, transform_indices = @transform_4, window_bounds = array<i64: 64, 8>}, {pipeline_mode = #tpu.pipeline_mode<synchronous>, transform_indices = @transform_5, window_bounds = array<i64: 1, 616>}, {transform_indices = @transform_6, window_bounds = array<i64: 2, 8, 8>}]} {
    %0 = tpu.iota {dimensions = array<i32: 0>} : vector<8x8xi32>
    %1 = tpu.iota {dimensions = array<i32: 1>} : vector<8x8xi32>
    %2 = arith.cmpi sle, %1, %0 : vector<8x8xi32>
    %cst = arith.constant 0.000000e+00 : f32
    %cst_0 = arith.constant -1.000000e+30 : f32
    %3 = vector.broadcast %cst : f32 to vector<8x8xf32>
    %4 = vector.broadcast %cst_0 : f32 to vector<8x8xf32>
    %5 = arith.select %2, %3, %4 : vector<8x8xi1>, vector<8x8xf32>
    %c0 = arith.constant 0 : index
    %c0_1 = arith.constant 0 : index
    %c0_2 = arith.constant 0 : index
    %6 = vector.load %arg1[%c0, %c0_1, %c0_2] : memref<2x8x16xf32, #tpu.memory_space<vmem>>, vector<2x8x16xf32>
    %7 = vector.shape_cast %6 : vector<2x8x16xf32> to vector<16x16xf32>
    %c0_3 = arith.constant 0 : index
    %c0_4 = arith.constant 0 : index
    %8 = vector.load %arg3[%c0_3, %c0_4] : memref<16x32xf32, #tpu.memory_space<vmem>>, vector<16x32xf32>
    %cst_5 = arith.constant dense<0.000000e+00> : vector<16x32xf32>
    %9 = tpu.matmul %7, %8, %cst_5 {dimension_numbers = #tpu.dot_dimension_numbers<[1], [0], [0], [1], [0, 0, 1, 1], [], []>} : vector<16x16xf32>, vector<16x32xf32>, vector<16x32xf32> -> vector<16x32xf32>
    %c0_6 = arith.constant 0 : index
    %c0_7 = arith.constant 0 : index
    %10 = vector.load %arg6[%c0_6, %c0_7] : memref<1x616xf32, #tpu.memory_space<vmem>>, vector<1x32xf32>
    %11 = vector.broadcast %10 : vector<1x32xf32> to vector<16x32xf32>
    %12 = arith.addf %9, %11 : vector<16x32xf32>
    %13 = vector.shape_cast %12 : vector<16x32xf32> to vector<2x8x32xf32>
    %c0_8 = arith.constant 0 : index
    %c0_9 = arith.constant 0 : index
    %14 = vector.load %arg2[%c0_8, %c0_9] : memref<8x32xf32, #tpu.memory_space<vmem>>, vector<8x32xf32>
    %15 = vector.shape_cast %14 : vector<8x32xf32> to vector<1x8x32xf32>
    %16 = vector.broadcast %15 : vector<1x8x32xf32> to vector<2x8x32xf32>
    %17 = arith.addf %13, %16 : vector<2x8x32xf32>
    %18 = vector.shape_cast %17 : vector<2x8x32xf32> to vector<16x32xf32>
    %c0_10 = arith.constant 0 : index
    %c0_11 = arith.constant 0 : index
    %19 = vector.load %arg4[%c0_10, %c0_11] : memref<32x384xf32, #tpu.memory_space<vmem>>, vector<32x96xf32>
    %cst_12 = arith.constant dense<0.000000e+00> : vector<16x96xf32>
    %20 = tpu.matmul %18, %19, %cst_12 {dimension_numbers = #tpu.dot_dimension_numbers<[1], [0], [0], [1], [0, 0, 1, 1], [], []>} : vector<16x32xf32>, vector<32x96xf32>, vector<16x96xf32> -> vector<16x96xf32>
    %c0_13 = arith.constant 0 : index
    %c32 = arith.constant 32 : index
    %21 = vector.load %arg6[%c0_13, %c32] : memref<1x616xf32, #tpu.memory_space<vmem>>, vector<1x96xf32>
    %22 = vector.broadcast %21 : vector<1x96xf32> to vector<16x96xf32>
    %23 = arith.addf %20, %22 : vector<16x96xf32>
    %24 = vector.extract_strided_slice %23 {offsets = [0, 0], sizes = [16, 32], strides = [1, 1]} : vector<16x96xf32> to vector<16x32xf32>
    %25 = vector.extract_strided_slice %23 {offsets = [0, 32], sizes = [16, 32], strides = [1, 1]} : vector<16x96xf32> to vector<16x32xf32>
    %26 = vector.extract_strided_slice %23 {offsets = [0, 64], sizes = [16, 32], strides = [1, 1]} : vector<16x96xf32> to vector<16x32xf32>
    %c0_14 = arith.constant 0 : index
    %c96 = arith.constant 96 : index
    %27 = vector.load %arg4[%c0_14, %c96] : memref<32x384xf32, #tpu.memory_space<vmem>>, vector<32x32xf32>
    %c0_15 = arith.constant 0 : index
    %c128 = arith.constant 128 : index
    %28 = vector.load %arg6[%c0_15, %c128] : memref<1x616xf32, #tpu.memory_space<vmem>>, vector<1x32xf32>
    %cst_16 = arith.constant 0.353553385 : f32
    %29 = vector.broadcast %cst_16 : f32 to vector<16x32xf32>
    %30 = arith.mulf %24, %29 : vector<16x32xf32>
    %31 = vector.extract_strided_slice %30 {offsets = [0, 0], sizes = [16, 8], strides = [1, 1]} : vector<16x32xf32> to vector<16x8xf32>
    %32 = vector.extract_strided_slice %30 {offsets = [0, 8], sizes = [16, 8], strides = [1, 1]} : vector<16x32xf32> to vector<16x8xf32>
    %33 = vector.extract_strided_slice %30 {offsets = [0, 16], sizes = [16, 8], strides = [1, 1]} : vector<16x32xf32> to vector<16x8xf32>
    %34 = vector.extract_strided_slice %30 {offsets = [0, 24], sizes = [16, 8], strides = [1, 1]} : vector<16x32xf32> to vector<16x8xf32>
    %35 = vector.shape_cast %31 : vector<16x8xf32> to vector<1x16x8xf32>
    %36 = vector.shape_cast %32 : vector<16x8xf32> to vector<1x16x8xf32>
    %37 = vector.shape_cast %33 : vector<16x8xf32> to vector<1x16x8xf32>
    %38 = vector.shape_cast %34 : vector<16x8xf32> to vector<1x16x8xf32>
    %39 = tpu.concatenate %35, %36, %37, %38 in 0 : vector<1x16x8xf32>, vector<1x16x8xf32>, vector<1x16x8xf32>, vector<1x16x8xf32> -> vector<4x16x8xf32>
    %40 = vector.shape_cast %39 : vector<4x16x8xf32> to vector<8x8x8xf32>
    %41 = vector.extract_strided_slice %25 {offsets = [0, 0], sizes = [16, 8], strides = [1, 1]} : vector<16x32xf32> to vector<16x8xf32>
    %42 = vector.extract_strided_slice %25 {offsets = [0, 8], sizes = [16, 8], strides = [1, 1]} : vector<16x32xf32> to vector<16x8xf32>
    %43 = vector.extract_strided_slice %25 {offsets = [0, 16], sizes = [16, 8], strides = [1, 1]} : vector<16x32xf32> to vector<16x8xf32>
    %44 = vector.extract_strided_slice %25 {offsets = [0, 24], sizes = [16, 8], strides = [1, 1]} : vector<16x32xf32> to vector<16x8xf32>
    %45 = vector.shape_cast %41 : vector<16x8xf32> to vector<1x16x8xf32>
    %46 = vector.shape_cast %42 : vector<16x8xf32> to vector<1x16x8xf32>
    %47 = vector.shape_cast %43 : vector<16x8xf32> to vector<1x16x8xf32>
    %48 = vector.shape_cast %44 : vector<16x8xf32> to vector<1x16x8xf32>
    %49 = tpu.concatenate %45, %46, %47, %48 in 0 : vector<1x16x8xf32>, vector<1x16x8xf32>, vector<1x16x8xf32>, vector<1x16x8xf32> -> vector<4x16x8xf32>
    %50 = vector.shape_cast %49 : vector<4x16x8xf32> to vector<8x8x8xf32>
    %51 = vector.extract_strided_slice %26 {offsets = [0, 0], sizes = [16, 8], strides = [1, 1]} : vector<16x32xf32> to vector<16x8xf32>
    %52 = vector.extract_strided_slice %26 {offsets = [0, 8], sizes = [16, 8], strides = [1, 1]} : vector<16x32xf32> to vector<16x8xf32>
    %53 = vector.extract_strided_slice %26 {offsets = [0, 16], sizes = [16, 8], strides = [1, 1]} : vector<16x32xf32> to vector<16x8xf32>
    %54 = vector.extract_strided_slice %26 {offsets = [0, 24], sizes = [16, 8], strides = [1, 1]} : vector<16x32xf32> to vector<16x8xf32>
    %55 = vector.shape_cast %51 : vector<16x8xf32> to vector<1x16x8xf32>
    %56 = vector.shape_cast %52 : vector<16x8xf32> to vector<1x16x8xf32>
    %57 = vector.shape_cast %53 : vector<16x8xf32> to vector<1x16x8xf32>
    %58 = vector.shape_cast %54 : vector<16x8xf32> to vector<1x16x8xf32>
    %59 = tpu.concatenate %55, %56, %57, %58 in 0 : vector<1x16x8xf32>, vector<1x16x8xf32>, vector<1x16x8xf32>, vector<1x16x8xf32> -> vector<4x16x8xf32>
    %60 = vector.shape_cast %59 : vector<4x16x8xf32> to vector<8x8x8xf32>
    "tpu.trace_start"() <{level = 10 : i32, message = "xqd,xkd->xqk"}> : () -> ()
    %cst_17 = arith.constant dense<0.000000e+00> : vector<8x8x8xf32>
    %61 = tpu.matmul %40, %50, %cst_17 {dimension_numbers = #tpu.dot_dimension_numbers<[2], [2], [1], [1], [0, 0, 0, 1, 1, 1], [0], [0]>} : vector<8x8x8xf32>, vector<8x8x8xf32>, vector<8x8x8xf32> -> vector<8x8x8xf32>
    "tpu.trace_stop"() : () -> ()
    %62 = vector.shape_cast %5 : vector<8x8xf32> to vector<1x8x8xf32>
    %63 = vector.broadcast %62 : vector<1x8x8xf32> to vector<8x8x8xf32>
    %64 = arith.addf %61, %63 : vector<8x8x8xf32>
    %cst_18 = arith.constant dense<0xFF800000> : vector<8x8xf32>
    %65 = vector.multi_reduction <maximumf>, %64, %cst_18 [2] : vector<8x8x8xf32> to vector<8x8xf32>
    %66 = vector.shape_cast %65 : vector<8x8xf32> to vector<8x8x1xf32>
    %67 = vector.broadcast %66 : vector<8x8x1xf32> to vector<8x8x8xf32>
    %68 = arith.subf %64, %67 : vector<8x8x8xf32>
    %69 = math.exp %68 : vector<8x8x8xf32>
    %cst_19 = arith.constant dense<0.000000e+00> : vector<8x8xf32>
    %70 = vector.multi_reduction <add>, %69, %cst_19 [2] : vector<8x8x8xf32> to vector<8x8xf32>
    %71 = vector.shape_cast %70 : vector<8x8xf32> to vector<8x8x1xf32>
    %72 = tpu.reciprocal %71 {approx = true} : vector<8x8x1xf32> -> vector<8x8x1xf32>
    %73 = vector.broadcast %72 : vector<8x8x1xf32> to vector<8x8x8xf32>
    %74 = arith.mulf %69, %73 : vector<8x8x8xf32>
    "tpu.trace_start"() <{level = 10 : i32, message = "xqk,xkd->xqd"}> : () -> ()
    %cst_20 = arith.constant dense<0.000000e+00> : vector<8x8x8xf32>
    %75 = tpu.matmul %74, %60, %cst_20 {dimension_numbers = #tpu.dot_dimension_numbers<[2], [1], [1], [2], [0, 0, 0, 1, 1, 2], [0], [0]>} : vector<8x8x8xf32>, vector<8x8x8xf32>, vector<8x8x8xf32> -> vector<8x8x8xf32>
    "tpu.trace_stop"() : () -> ()
    %76 = vector.shape_cast %75 : vector<8x8x8xf32> to vector<4x16x8xf32>
    %77 = vector.extract_strided_slice %76 {offsets = [0, 0, 0], sizes = [1, 16, 8], strides = [1, 1, 1]} : vector<4x16x8xf32> to vector<1x16x8xf32>
    %78 = vector.shape_cast %77 : vector<1x16x8xf32> to vector<16x8xf32>
    %79 = vector.extract_strided_slice %76 {offsets = [1, 0, 0], sizes = [1, 16, 8], strides = [1, 1, 1]} : vector<4x16x8xf32> to vector<1x16x8xf32>
    %80 = vector.shape_cast %79 : vector<1x16x8xf32> to vector<16x8xf32>
    %81 = vector.extract_strided_slice %76 {offsets = [2, 0, 0], sizes = [1, 16, 8], strides = [1, 1, 1]} : vector<4x16x8xf32> to vector<1x16x8xf32>
    %82 = vector.shape_cast %81 : vector<1x16x8xf32> to vector<16x8xf32>
    %83 = vector.extract_strided_slice %76 {offsets = [3, 0, 0], sizes = [1, 16, 8], strides = [1, 1, 1]} : vector<4x16x8xf32> to vector<1x16x8xf32>
    %84 = vector.shape_cast %83 : vector<1x16x8xf32> to vector<16x8xf32>
    %85 = tpu.concatenate %78, %80, %82, %84 in 1 : vector<16x8xf32>, vector<16x8xf32>, vector<16x8xf32>, vector<16x8xf32> -> vector<16x32xf32>
    %cst_21 = arith.constant dense<0.000000e+00> : vector<16x32xf32>
    %86 = tpu.matmul %85, %27, %cst_21 {dimension_numbers = #tpu.dot_dimension_numbers<[1], [0], [0], [1], [0, 0, 1, 1], [], []>} : vector<16x32xf32>, vector<32x32xf32>, vector<16x32xf32> -> vector<16x32xf32>
    %87 = vector.broadcast %28 : vector<1x32xf32> to vector<16x32xf32>
    %88 = arith.addf %86, %87 : vector<16x32xf32>
    %89 = arith.addf %18, %88 : vector<16x32xf32>
    %c0_22 = arith.constant 0 : index
    %c288 = arith.constant 288 : index
    %90 = vector.load %arg6[%c0_22, %c288] : memref<1x616xf32, #tpu.memory_space<vmem>>, vector<1x32xf32>
    %c0_23 = arith.constant 0 : index
    %c320 = arith.constant 320 : index
    %91 = vector.load %arg6[%c0_23, %c320] : memref<1x616xf32, #tpu.memory_space<vmem>>, vector<1x32xf32>
    %cst_24 = arith.constant dense<0.000000e+00> : vector<16xf32>
    %92 = vector.multi_reduction <add>, %89, %cst_24 [1] : vector<16x32xf32> to vector<16xf32>
    %93 = vector.shape_cast %92 : vector<16xf32> to vector<16x1xf32>
    %cst_25 = arith.constant 3.200000e+01 : f32
    %94 = vector.broadcast %cst_25 : f32 to vector<16x1xf32>
    %95 = arith.divf %93, %94 : vector<16x1xf32>
    %96 = vector.broadcast %95 : vector<16x1xf32> to vector<16x32xf32>
    %97 = arith.subf %89, %96 : vector<16x32xf32>
    %98 = arith.mulf %97, %97 : vector<16x32xf32>
    %cst_26 = arith.constant dense<0.000000e+00> : vector<16xf32>
    %99 = vector.multi_reduction <add>, %98, %cst_26 [1] : vector<16x32xf32> to vector<16xf32>
    %100 = vector.shape_cast %99 : vector<16xf32> to vector<16x1xf32>
    %cst_27 = arith.constant 3.200000e+01 : f32
    %101 = vector.broadcast %cst_27 : f32 to vector<16x1xf32>
    %102 = arith.divf %100, %101 : vector<16x1xf32>
    %103 = vector.broadcast %95 : vector<16x1xf32> to vector<16x32xf32>
    %104 = arith.subf %89, %103 : vector<16x32xf32>
    %cst_28 = arith.constant 9.99999974E-6 : f32
    %105 = vector.broadcast %cst_28 : f32 to vector<16x1xf32>
    %106 = arith.addf %102, %105 : vector<16x1xf32>
    %107 = math.rsqrt %106 : vector<16x1xf32>
    %108 = vector.broadcast %107 : vector<16x1xf32> to vector<16x32xf32>
    %109 = arith.mulf %104, %108 : vector<16x32xf32>
    %110 = vector.broadcast %90 : vector<1x32xf32> to vector<16x32xf32>
    %111 = arith.mulf %109, %110 : vector<16x32xf32>
    %112 = vector.broadcast %91 : vector<1x32xf32> to vector<16x32xf32>
    %113 = arith.addf %111, %112 : vector<16x32xf32>
    %c0_29 = arith.constant 0 : index
    %c128_30 = arith.constant 128 : index
    %114 = vector.load %arg4[%c0_29, %c128_30] : memref<32x384xf32, #tpu.memory_space<vmem>>, vector<32x96xf32>
    %c0_31 = arith.constant 0 : index
    %c160 = arith.constant 160 : index
    %115 = vector.load %arg6[%c0_31, %c160] : memref<1x616xf32, #tpu.memory_space<vmem>>, vector<1x96xf32>
    %116 = vector.extract_strided_slice %114 {offsets = [0, 0], sizes = [32, 32], strides = [1, 1]} : vector<32x96xf32> to vector<32x32xf32>
    %cst_32 = arith.constant dense<0.000000e+00> : vector<16x32xf32>
    %117 = tpu.matmul %113, %116, %cst_32 {dimension_numbers = #tpu.dot_dimension_numbers<[1], [0], [0], [1], [0, 0, 1, 1], [], []>} : vector<16x32xf32>, vector<32x32xf32>, vector<16x32xf32> -> vector<16x32xf32>
    %118 = vector.extract_strided_slice %115 {offsets = [0, 0], sizes = [1, 32], strides = [1, 1]} : vector<1x96xf32> to vector<1x32xf32>
    %119 = vector.broadcast %118 : vector<1x32xf32> to vector<16x32xf32>
    %120 = arith.addf %117, %119 : vector<16x32xf32>
    %121 = vector.extract_strided_slice %114 {offsets = [0, 32], sizes = [32, 32], strides = [1, 1]} : vector<32x96xf32> to vector<32x32xf32>
    %cst_33 = arith.constant dense<0.000000e+00> : vector<16x32xf32>
    %122 = tpu.matmul %18, %121, %cst_33 {dimension_numbers = #tpu.dot_dimension_numbers<[1], [0], [0], [1], [0, 0, 1, 1], [], []>} : vector<16x32xf32>, vector<32x32xf32>, vector<16x32xf32> -> vector<16x32xf32>
    %123 = vector.extract_strided_slice %115 {offsets = [0, 32], sizes = [1, 32], strides = [1, 1]} : vector<1x96xf32> to vector<1x32xf32>
    %124 = vector.broadcast %123 : vector<1x32xf32> to vector<16x32xf32>
    %125 = arith.addf %122, %124 : vector<16x32xf32>
    %126 = vector.extract_strided_slice %114 {offsets = [0, 64], sizes = [32, 32], strides = [1, 1]} : vector<32x96xf32> to vector<32x32xf32>
    %cst_34 = arith.constant dense<0.000000e+00> : vector<16x32xf32>
    %127 = tpu.matmul %18, %126, %cst_34 {dimension_numbers = #tpu.dot_dimension_numbers<[1], [0], [0], [1], [0, 0, 1, 1], [], []>} : vector<16x32xf32>, vector<32x32xf32>, vector<16x32xf32> -> vector<16x32xf32>
    %128 = vector.extract_strided_slice %115 {offsets = [0, 64], sizes = [1, 32], strides = [1, 1]} : vector<1x96xf32> to vector<1x32xf32>
    %129 = vector.broadcast %128 : vector<1x32xf32> to vector<16x32xf32>
    %130 = arith.addf %127, %129 : vector<16x32xf32>
    %c0_35 = arith.constant 0 : index
    %c224 = arith.constant 224 : index
    %131 = vector.load %arg4[%c0_35, %c224] : memref<32x384xf32, #tpu.memory_space<vmem>>, vector<32x32xf32>
    %c0_36 = arith.constant 0 : index
    %c256 = arith.constant 256 : index
    %132 = vector.load %arg6[%c0_36, %c256] : memref<1x616xf32, #tpu.memory_space<vmem>>, vector<1x32xf32>
    %cst_37 = arith.constant 0.353553385 : f32
    %133 = vector.broadcast %cst_37 : f32 to vector<16x32xf32>
    %134 = arith.mulf %120, %133 : vector<16x32xf32>
    %135 = vector.extract_strided_slice %134 {offsets = [0, 0], sizes = [16, 8], strides = [1, 1]} : vector<16x32xf32> to vector<16x8xf32>
    %136 = vector.extract_strided_slice %134 {offsets = [0, 8], sizes = [16, 8], strides = [1, 1]} : vector<16x32xf32> to vector<16x8xf32>
    %137 = vector.extract_strided_slice %134 {offsets = [0, 16], sizes = [16, 8], strides = [1, 1]} : vector<16x32xf32> to vector<16x8xf32>
    %138 = vector.extract_strided_slice %134 {offsets = [0, 24], sizes = [16, 8], strides = [1, 1]} : vector<16x32xf32> to vector<16x8xf32>
    %139 = vector.shape_cast %135 : vector<16x8xf32> to vector<1x16x8xf32>
    %140 = vector.shape_cast %136 : vector<16x8xf32> to vector<1x16x8xf32>
    %141 = vector.shape_cast %137 : vector<16x8xf32> to vector<1x16x8xf32>
    %142 = vector.shape_cast %138 : vector<16x8xf32> to vector<1x16x8xf32>
    %143 = tpu.concatenate %139, %140, %141, %142 in 0 : vector<1x16x8xf32>, vector<1x16x8xf32>, vector<1x16x8xf32>, vector<1x16x8xf32> -> vector<4x16x8xf32>
    %144 = vector.shape_cast %143 : vector<4x16x8xf32> to vector<8x8x8xf32>
    %145 = vector.extract_strided_slice %125 {offsets = [0, 0], sizes = [16, 8], strides = [1, 1]} : vector<16x32xf32> to vector<16x8xf32>
    %146 = vector.extract_strided_slice %125 {offsets = [0, 8], sizes = [16, 8], strides = [1, 1]} : vector<16x32xf32> to vector<16x8xf32>
    %147 = vector.extract_strided_slice %125 {offsets = [0, 16], sizes = [16, 8], strides = [1, 1]} : vector<16x32xf32> to vector<16x8xf32>
    %148 = vector.extract_strided_slice %125 {offsets = [0, 24], sizes = [16, 8], strides = [1, 1]} : vector<16x32xf32> to vector<16x8xf32>
    %149 = vector.shape_cast %145 : vector<16x8xf32> to vector<1x16x8xf32>
    %150 = vector.shape_cast %146 : vector<16x8xf32> to vector<1x16x8xf32>
    %151 = vector.shape_cast %147 : vector<16x8xf32> to vector<1x16x8xf32>
    %152 = vector.shape_cast %148 : vector<16x8xf32> to vector<1x16x8xf32>
    %153 = tpu.concatenate %149, %150, %151, %152 in 0 : vector<1x16x8xf32>, vector<1x16x8xf32>, vector<1x16x8xf32>, vector<1x16x8xf32> -> vector<4x16x8xf32>
    %154 = vector.shape_cast %153 : vector<4x16x8xf32> to vector<8x8x8xf32>
    %155 = vector.extract_strided_slice %130 {offsets = [0, 0], sizes = [16, 8], strides = [1, 1]} : vector<16x32xf32> to vector<16x8xf32>
    %156 = vector.extract_strided_slice %130 {offsets = [0, 8], sizes = [16, 8], strides = [1, 1]} : vector<16x32xf32> to vector<16x8xf32>
    %157 = vector.extract_strided_slice %130 {offsets = [0, 16], sizes = [16, 8], strides = [1, 1]} : vector<16x32xf32> to vector<16x8xf32>
    %158 = vector.extract_strided_slice %130 {offsets = [0, 24], sizes = [16, 8], strides = [1, 1]} : vector<16x32xf32> to vector<16x8xf32>
    %159 = vector.shape_cast %155 : vector<16x8xf32> to vector<1x16x8xf32>
    %160 = vector.shape_cast %156 : vector<16x8xf32> to vector<1x16x8xf32>
    %161 = vector.shape_cast %157 : vector<16x8xf32> to vector<1x16x8xf32>
    %162 = vector.shape_cast %158 : vector<16x8xf32> to vector<1x16x8xf32>
    %163 = tpu.concatenate %159, %160, %161, %162 in 0 : vector<1x16x8xf32>, vector<1x16x8xf32>, vector<1x16x8xf32>, vector<1x16x8xf32> -> vector<4x16x8xf32>
    %164 = vector.shape_cast %163 : vector<4x16x8xf32> to vector<8x8x8xf32>
    "tpu.trace_start"() <{level = 10 : i32, message = "xqd,xkd->xqk"}> : () -> ()
    %cst_38 = arith.constant dense<0.000000e+00> : vector<8x8x8xf32>
    %165 = tpu.matmul %144, %154, %cst_38 {dimension_numbers = #tpu.dot_dimension_numbers<[2], [2], [1], [1], [0, 0, 0, 1, 1, 1], [0], [0]>} : vector<8x8x8xf32>, vector<8x8x8xf32>, vector<8x8x8xf32> -> vector<8x8x8xf32>
    "tpu.trace_stop"() : () -> ()
    %cst_39 = arith.constant dense<0xFF800000> : vector<8x8xf32>
    %166 = vector.multi_reduction <maximumf>, %165, %cst_39 [2] : vector<8x8x8xf32> to vector<8x8xf32>
    %167 = vector.shape_cast %166 : vector<8x8xf32> to vector<8x8x1xf32>
    %168 = vector.broadcast %167 : vector<8x8x1xf32> to vector<8x8x8xf32>
    %169 = arith.subf %165, %168 : vector<8x8x8xf32>
    %170 = math.exp %169 : vector<8x8x8xf32>
    %cst_40 = arith.constant dense<0.000000e+00> : vector<8x8xf32>
    %171 = vector.multi_reduction <add>, %170, %cst_40 [2] : vector<8x8x8xf32> to vector<8x8xf32>
    %172 = vector.shape_cast %171 : vector<8x8xf32> to vector<8x8x1xf32>
    %173 = tpu.reciprocal %172 {approx = true} : vector<8x8x1xf32> -> vector<8x8x1xf32>
    %174 = vector.broadcast %173 : vector<8x8x1xf32> to vector<8x8x8xf32>
    %175 = arith.mulf %170, %174 : vector<8x8x8xf32>
    "tpu.trace_start"() <{level = 10 : i32, message = "xqk,xkd->xqd"}> : () -> ()
    %cst_41 = arith.constant dense<0.000000e+00> : vector<8x8x8xf32>
    %176 = tpu.matmul %175, %164, %cst_41 {dimension_numbers = #tpu.dot_dimension_numbers<[2], [1], [1], [2], [0, 0, 0, 1, 1, 2], [0], [0]>} : vector<8x8x8xf32>, vector<8x8x8xf32>, vector<8x8x8xf32> -> vector<8x8x8xf32>
    "tpu.trace_stop"() : () -> ()
    %177 = vector.shape_cast %176 : vector<8x8x8xf32> to vector<4x16x8xf32>
    %178 = vector.extract_strided_slice %177 {offsets = [0, 0, 0], sizes = [1, 16, 8], strides = [1, 1, 1]} : vector<4x16x8xf32> to vector<1x16x8xf32>
    %179 = vector.shape_cast %178 : vector<1x16x8xf32> to vector<16x8xf32>
    %180 = vector.extract_strided_slice %177 {offsets = [1, 0, 0], sizes = [1, 16, 8], strides = [1, 1, 1]} : vector<4x16x8xf32> to vector<1x16x8xf32>
    %181 = vector.shape_cast %180 : vector<1x16x8xf32> to vector<16x8xf32>
    %182 = vector.extract_strided_slice %177 {offsets = [2, 0, 0], sizes = [1, 16, 8], strides = [1, 1, 1]} : vector<4x16x8xf32> to vector<1x16x8xf32>
    %183 = vector.shape_cast %182 : vector<1x16x8xf32> to vector<16x8xf32>
    %184 = vector.extract_strided_slice %177 {offsets = [3, 0, 0], sizes = [1, 16, 8], strides = [1, 1, 1]} : vector<4x16x8xf32> to vector<1x16x8xf32>
    %185 = vector.shape_cast %184 : vector<1x16x8xf32> to vector<16x8xf32>
    %186 = tpu.concatenate %179, %181, %183, %185 in 1 : vector<16x8xf32>, vector<16x8xf32>, vector<16x8xf32>, vector<16x8xf32> -> vector<16x32xf32>
    %cst_42 = arith.constant dense<0.000000e+00> : vector<16x32xf32>
    %187 = tpu.matmul %186, %131, %cst_42 {dimension_numbers = #tpu.dot_dimension_numbers<[1], [0], [0], [1], [0, 0, 1, 1], [], []>} : vector<16x32xf32>, vector<32x32xf32>, vector<16x32xf32> -> vector<16x32xf32>
    %188 = vector.broadcast %132 : vector<1x32xf32> to vector<16x32xf32>
    %189 = arith.addf %187, %188 : vector<16x32xf32>
    %190 = arith.addf %113, %189 : vector<16x32xf32>
    %c0_43 = arith.constant 0 : index
    %c352 = arith.constant 352 : index
    %191 = vector.load %arg6[%c0_43, %c352] : memref<1x616xf32, #tpu.memory_space<vmem>>, vector<1x32xf32>
    %c0_44 = arith.constant 0 : index
    %c384 = arith.constant 384 : index
    %192 = vector.load %arg6[%c0_44, %c384] : memref<1x616xf32, #tpu.memory_space<vmem>>, vector<1x32xf32>
    %cst_45 = arith.constant dense<0.000000e+00> : vector<16xf32>
    %193 = vector.multi_reduction <add>, %190, %cst_45 [1] : vector<16x32xf32> to vector<16xf32>
    %194 = vector.shape_cast %193 : vector<16xf32> to vector<16x1xf32>
    %cst_46 = arith.constant 3.200000e+01 : f32
    %195 = vector.broadcast %cst_46 : f32 to vector<16x1xf32>
    %196 = arith.divf %194, %195 : vector<16x1xf32>
    %197 = vector.broadcast %196 : vector<16x1xf32> to vector<16x32xf32>
    %198 = arith.subf %190, %197 : vector<16x32xf32>
    %199 = arith.mulf %198, %198 : vector<16x32xf32>
    %cst_47 = arith.constant dense<0.000000e+00> : vector<16xf32>
    %200 = vector.multi_reduction <add>, %199, %cst_47 [1] : vector<16x32xf32> to vector<16xf32>
    %201 = vector.shape_cast %200 : vector<16xf32> to vector<16x1xf32>
    %cst_48 = arith.constant 3.200000e+01 : f32
    %202 = vector.broadcast %cst_48 : f32 to vector<16x1xf32>
    %203 = arith.divf %201, %202 : vector<16x1xf32>
    %204 = vector.broadcast %196 : vector<16x1xf32> to vector<16x32xf32>
    %205 = arith.subf %190, %204 : vector<16x32xf32>
    %cst_49 = arith.constant 9.99999974E-6 : f32
    %206 = vector.broadcast %cst_49 : f32 to vector<16x1xf32>
    %207 = arith.addf %203, %206 : vector<16x1xf32>
    %208 = math.rsqrt %207 : vector<16x1xf32>
    %209 = vector.broadcast %208 : vector<16x1xf32> to vector<16x32xf32>
    %210 = arith.mulf %205, %209 : vector<16x32xf32>
    %211 = vector.broadcast %191 : vector<1x32xf32> to vector<16x32xf32>
    %212 = arith.mulf %210, %211 : vector<16x32xf32>
    %213 = vector.broadcast %192 : vector<1x32xf32> to vector<16x32xf32>
    %214 = arith.addf %212, %213 : vector<16x32xf32>
    %c0_50 = arith.constant 0 : index
    %c256_51 = arith.constant 256 : index
    %215 = vector.load %arg4[%c0_50, %c256_51] : memref<32x384xf32, #tpu.memory_space<vmem>>, vector<32x32xf32>
    %cst_52 = arith.constant dense<0.000000e+00> : vector<16x32xf32>
    %216 = tpu.matmul %214, %215, %cst_52 {dimension_numbers = #tpu.dot_dimension_numbers<[1], [0], [0], [1], [0, 0, 1, 1], [], []>} : vector<16x32xf32>, vector<32x32xf32>, vector<16x32xf32> -> vector<16x32xf32>
    %c0_53 = arith.constant 0 : index
    %c480 = arith.constant 480 : index
    %217 = vector.load %arg6[%c0_53, %c480] : memref<1x616xf32, #tpu.memory_space<vmem>>, vector<1x32xf32>
    %218 = vector.broadcast %217 : vector<1x32xf32> to vector<16x32xf32>
    %219 = arith.addf %216, %218 : vector<16x32xf32>
    %cst_54 = arith.constant 0.000000e+00 : f32
    %220 = vector.broadcast %cst_54 : f32 to vector<16x32xf32>
    %221 = arith.maximumf %219, %220 : vector<16x32xf32>
    %c0_55 = arith.constant 0 : index
    %c288_56 = arith.constant 288 : index
    %222 = vector.load %arg4[%c0_55, %c288_56] : memref<32x384xf32, #tpu.memory_space<vmem>>, vector<32x32xf32>
    %cst_57 = arith.constant dense<0.000000e+00> : vector<16x32xf32>
    %223 = tpu.matmul %221, %222, %cst_57 {dimension_numbers = #tpu.dot_dimension_numbers<[1], [0], [0], [1], [0, 0, 1, 1], [], []>} : vector<16x32xf32>, vector<32x32xf32>, vector<16x32xf32> -> vector<16x32xf32>
    %c0_58 = arith.constant 0 : index
    %c512 = arith.constant 512 : index
    %224 = vector.load %arg6[%c0_58, %c512] : memref<1x616xf32, #tpu.memory_space<vmem>>, vector<1x32xf32>
    %225 = vector.broadcast %224 : vector<1x32xf32> to vector<16x32xf32>
    %226 = arith.addf %223, %225 : vector<16x32xf32>
    %227 = arith.addf %214, %226 : vector<16x32xf32>
    %c0_59 = arith.constant 0 : index
    %c416 = arith.constant 416 : index
    %228 = vector.load %arg6[%c0_59, %c416] : memref<1x616xf32, #tpu.memory_space<vmem>>, vector<1x32xf32>
    %c0_60 = arith.constant 0 : index
    %c448 = arith.constant 448 : index
    %229 = vector.load %arg6[%c0_60, %c448] : memref<1x616xf32, #tpu.memory_space<vmem>>, vector<1x32xf32>
    %cst_61 = arith.constant dense<0.000000e+00> : vector<16xf32>
    %230 = vector.multi_reduction <add>, %227, %cst_61 [1] : vector<16x32xf32> to vector<16xf32>
    %231 = vector.shape_cast %230 : vector<16xf32> to vector<16x1xf32>
    %cst_62 = arith.constant 3.200000e+01 : f32
    %232 = vector.broadcast %cst_62 : f32 to vector<16x1xf32>
    %233 = arith.divf %231, %232 : vector<16x1xf32>
    %234 = vector.broadcast %233 : vector<16x1xf32> to vector<16x32xf32>
    %235 = arith.subf %227, %234 : vector<16x32xf32>
    %236 = arith.mulf %235, %235 : vector<16x32xf32>
    %cst_63 = arith.constant dense<0.000000e+00> : vector<16xf32>
    %237 = vector.multi_reduction <add>, %236, %cst_63 [1] : vector<16x32xf32> to vector<16xf32>
    %238 = vector.shape_cast %237 : vector<16xf32> to vector<16x1xf32>
    %cst_64 = arith.constant 3.200000e+01 : f32
    %239 = vector.broadcast %cst_64 : f32 to vector<16x1xf32>
    %240 = arith.divf %238, %239 : vector<16x1xf32>
    %241 = vector.broadcast %233 : vector<16x1xf32> to vector<16x32xf32>
    %242 = arith.subf %227, %241 : vector<16x32xf32>
    %cst_65 = arith.constant 9.99999974E-6 : f32
    %243 = vector.broadcast %cst_65 : f32 to vector<16x1xf32>
    %244 = arith.addf %240, %243 : vector<16x1xf32>
    %245 = math.rsqrt %244 : vector<16x1xf32>
    %246 = vector.broadcast %245 : vector<16x1xf32> to vector<16x32xf32>
    %247 = arith.mulf %242, %246 : vector<16x32xf32>
    %248 = vector.broadcast %228 : vector<1x32xf32> to vector<16x32xf32>
    %249 = arith.mulf %247, %248 : vector<16x32xf32>
    %250 = vector.broadcast %229 : vector<1x32xf32> to vector<16x32xf32>
    %251 = arith.addf %249, %250 : vector<16x32xf32>
    %c0_66 = arith.constant 0 : index
    %c320_67 = arith.constant 320 : index
    %252 = vector.load %arg4[%c0_66, %c320_67] : memref<32x384xf32, #tpu.memory_space<vmem>>, vector<32x64xf32>
    %cst_68 = arith.constant dense<0.000000e+00> : vector<16x64xf32>
    %253 = tpu.matmul %251, %252, %cst_68 {dimension_numbers = #tpu.dot_dimension_numbers<[1], [0], [0], [1], [0, 0, 1, 1], [], []>} : vector<16x32xf32>, vector<32x64xf32>, vector<16x64xf32> -> vector<16x64xf32>
    %c0_69 = arith.constant 0 : index
    %c544 = arith.constant 544 : index
    %254 = vector.load %arg6[%c0_69, %c544] : memref<1x616xf32, #tpu.memory_space<vmem>>, vector<1x64xf32>
    %255 = vector.broadcast %254 : vector<1x64xf32> to vector<16x64xf32>
    %256 = arith.addf %253, %255 : vector<16x64xf32>
    %cst_70 = arith.constant 0.000000e+00 : f32
    %257 = vector.broadcast %cst_70 : f32 to vector<16x64xf32>
    %258 = arith.maximumf %256, %257 : vector<16x64xf32>
    %c0_71 = arith.constant 0 : index
    %c0_72 = arith.constant 0 : index
    %259 = vector.load %arg5[%c0_71, %c0_72] : memref<64x8xf32, #tpu.memory_space<vmem>>, vector<64x8xf32>
    %cst_73 = arith.constant dense<0.000000e+00> : vector<16x8xf32>
    %260 = tpu.matmul %258, %259, %cst_73 {dimension_numbers = #tpu.dot_dimension_numbers<[1], [0], [0], [1], [0, 0, 1, 1], [], []>} : vector<16x64xf32>, vector<64x8xf32>, vector<16x8xf32> -> vector<16x8xf32>
    %c0_74 = arith.constant 0 : index
    %c608 = arith.constant 608 : index
    %261 = vector.load %arg6[%c0_74, %c608] : memref<1x616xf32, #tpu.memory_space<vmem>>, vector<1x8xf32>
    %262 = vector.broadcast %261 : vector<1x8xf32> to vector<16x8xf32>
    %263 = arith.addf %260, %262 : vector<16x8xf32>
    %264 = vector.shape_cast %263 : vector<16x8xf32> to vector<2x8x8xf32>
    %c0_75 = arith.constant 0 : index
    %c0_76 = arith.constant 0 : index
    %c0_77 = arith.constant 0 : index
    %265 = vector.load %arg7[%c0_75, %c0_76, %c0_77] : memref<2x8x8xf32, #tpu.memory_space<vmem>>, vector<2x8x8xf32>
    tpu.vector_store %arg7[%c0_75, %c0_76, %c0_77], %264 {strides = array<i32>} : memref<2x8x8xf32, #tpu.memory_space<vmem>>, vector<2x8x8xf32>,
    return
  }
  func.func @transform_0(%arg0: i32) -> (i32, i32, i32) {
    %c0_i32 = arith.constant 0 : i32
    %c0_i32_0 = arith.constant 0 : i32
    %c0_i32_1 = arith.constant 0 : i32
    return %arg0, %c0_i32, %c0_i32_0 : i32, i32, i32
  }
  func.func @transform_1(%arg0: i32) -> (i32, i32) {
    %c0_i32 = arith.constant 0 : i32
    %c0_i32_0 = arith.constant 0 : i32
    %c0_i32_1 = arith.constant 0 : i32
    return %c0_i32, %c0_i32_0 : i32, i32
  }
  func.func @transform_2(%arg0: i32) -> (i32, i32) {
    %c0_i32 = arith.constant 0 : i32
    %c0_i32_0 = arith.constant 0 : i32
    %c0_i32_1 = arith.constant 0 : i32
    return %c0_i32, %c0_i32_0 : i32, i32
  }
  func.func @transform_3(%arg0: i32) -> (i32, i32) {
    %c0_i32 = arith.constant 0 : i32
    %c0_i32_0 = arith.constant 0 : i32
    %c0_i32_1 = arith.constant 0 : i32
    return %c0_i32, %c0_i32_0 : i32, i32
  }
  func.func @transform_4(%arg0: i32) -> (i32, i32) {
    %c0_i32 = arith.constant 0 : i32
    %c0_i32_0 = arith.constant 0 : i32
    %c0_i32_1 = arith.constant 0 : i32
    return %c0_i32, %c0_i32_0 : i32, i32
  }
  func.func @transform_5(%arg0: i32) -> (i32, i32) {
    %c0_i32 = arith.constant 0 : i32
    %c0_i32_0 = arith.constant 0 : i32
    %c0_i32_1 = arith.constant 0 : i32
    return %c0_i32, %c0_i32_0 : i32, i32
  }
  func.func @transform_6(%arg0: i32) -> (i32, i32, i32) {
    %c0_i32 = arith.constant 0 : i32
    %c0_i32_0 = arith.constant 0 : i32
    %c0_i32_1 = arith.constant 0 : i32
    return %arg0, %c0_i32, %c0_i32_0 : i32, i32, i32
  }
}

</mosaic_0001>

<llo_original>
// kernel: tpu_custom_call.1
$region0: #{tpu_custom_call.1}
  #allocation0 [shape = 'u32[]', space=smem, size = 0x4, offset = 0x4, fixed_abs, tag = 'smem constant byte address 0x4 - core index']
  #allocation1 [shape = 'u32[72,128]{1,0:T(1,128)}', space=vmem, size = 0x9000, scoped, tag = 'internal scratch']
  %s0 = inlined_call_operand.vmem [shape: f32[4,8,16], index: 0, kind: input, shape index: {}]
  %s1 = inlined_call_operand.vmem [shape: f32[8,32], index: 1, kind: input, shape index: {}]
  %s2 = inlined_call_operand.vmem [shape: f32[16,32], index: 2, kind: input, shape index: {}]
  %s3 = inlined_call_operand.hbm [shape: f32[32,384], index: 3, kind: input, shape index: {}]
  %s4 = inlined_call_operand.vmem [shape: f32[64,8], index: 4, kind: input, shape index: {}]
  %s5 = inlined_call_operand.vmem [shape: f32[1,616], index: 5, kind: input, shape index: {}]
  %s6 = inlined_call_operand.hbm [shape: f32[4,8,8], index: 6, kind: output, shape index: {}]
  %s7 = sld [smem:[#allocation0]]
  $region61: #{tpu_custom_call.1} parent=0
    _
  %s9 = ssub.s32 1, %s7
  %s10 = scalar_select 0, %s9, %s7
  $region1: #{tpu_custom_call.1} parent=0
    #allocation2 [shape = 'u8[49152]{0}', space=vmem, size = 0xc000, scoped, tag = 'input window, operand 3, single buffered']
    #allocation3 [shape = 's32[2]{0}', space=sflag, size = 0x8, scoped, tag = 'scoped memory for tpu_custom_call.1']
    #allocation4 [shape = 's32[2]{0}', space=sflag, size = 0x8, scoped, tag = 'scoped memory for tpu_custom_call.1']
    #allocation5 [shape = 'u8[16384]{0}', space=vmem, size = 0x4000, scoped, tag = 'output window, operand 0']
    %11 = vsyncpa [#allocation3], 0
    %12 = vsyncpa [#allocation4], 0
    %s13 = scalar_lea.sflag [#allocation4], 1
    %14 = vsyncpa %s13, 0
    loop: start=0, step=1, limit=4
    $region2: #{tpu_custom_call.1} parent=1 // loop_pre_header
      _
    $region3: #{tpu_custom_call.1} parent=1 // loop_header
      %s16 = sphi 0, %s20
      %p17 = scmp.ge.s32.totalorder %s16, 4
      %s26 = sphi 0, %s28
      %s29 = sphi 0, %s26
      %s30 = sphi 0, %s29
      %s46 = sphi 0, %s30
      %s50 = sphi 0, %s50
      %s52 = sphi 0, %s50
      %s53 = sphi 0, %s52
      %s67 = sphi 0, %s53
      %s71 = sphi 0, %s71
      %s73 = sphi 0, %s71
      %s74 = sphi 0, %s73
      %s88 = sphi 0, %s74
      %s92 = sphi 0, %s92
      %s94 = sphi 0, %s92
      %s95 = sphi 0, %s94
      %s109 = sphi 0, %s95
      %s113 = sphi 0, %s113
      %s115 = sphi 0, %s113
      %s116 = sphi 0, %s115
      %s130 = sphi 0, %s116
      %s134 = sphi 0, %s134
      %s136 = sphi 0, %s134
      %s137 = sphi 0, %s136
      %s151 = sphi 0, %s137
      %s157 = sphi 0, %s159
      %s160 = sphi 0, %s157
      %s161 = sphi 0, %s160
      %s177 = sphi 0, %s161
    $region4: #{tpu_custom_call.1} parent=1 // loop_header_branch
      %19 = sbr.rel (%p17) target = $region8
    $region5: #{tpu_custom_call.1} parent=1 // loop_body
      %s21 = ssub.s32 %s16, 1
      %s22 = ssub.s32 %s16, 2
      %s23 = sadd.s32 %s16, 1
      %s24 = ssub.s32 %s16, %s23
      %p25 = scmp.eq.s32.totalorder %s24, 0
      %s27 = sadd.s32 %s26, 1
      %s28 = scalar_select %p25, %s26, %s27
      %p31 = pneg %p25
      %p32 = scmp.eq.s32.totalorder %s16, 1
      %p33 = por %p31, %p32
      %p34 = scmp.ne.s32.totalorder %s26, %s29
      %p35 = scmp.eq.s32.totalorder %s16, 0
      %p36 = por %p34, %p35
      %p37 = scmp.ne.s32.totalorder %s26, %s29
      %p38 = scmp.eq.s32.totalorder %s21, 1
      %p39 = por %p37, %p38
      %p40 = scmp.ne.s32.totalorder %s29, %s30
      %p41 = scmp.eq.s32.totalorder %s21, 0
      %p42 = por %p40, %p41
      %p43 = scmp.ne.s32.totalorder %s29, %s30
      %p44 = scmp.eq.s32.totalorder %s22, 1
      %p45 = por %p43, %p44
      %p47 = scmp.ne.s32.totalorder %s30, %s46
      %p48 = scmp.eq.s32.totalorder %s22, 0
      %p49 = por %p47, %p48
      %s51 = sadd.s32 %s50, 1
      %p54 = scmp.eq.s32.totalorder %s16, 1
      %p55 = scmp.ne.s32.totalorder %s50, %s52
      %p56 = scmp.eq.s32.totalorder %s16, 0
      %p57 = por %p55, %p56
      %p58 = scmp.ne.s32.totalorder %s50, %s52
      %p59 = scmp.eq.s32.totalorder %s21, 1
      %p60 = por %p58, %p59
      %p61 = scmp.ne.s32.totalorder %s52, %s53
      %p62 = scmp.eq.s32.totalorder %s21, 0
      %p63 = por %p61, %p62
      %p64 = scmp.ne.s32.totalorder %s52, %s53
      %p65 = scmp.eq.s32.totalorder %s22, 1
      %p66 = por %p64, %p65
      %p68 = scmp.ne.s32.totalorder %s53, %s67
      %p69 = scmp.eq.s32.totalorder %s22, 0
      %p70 = por %p68, %p69
      %s72 = sadd.s32 %s71, 1
      %p75 = scmp.eq.s32.totalorder %s16, 1
      %p76 = scmp.ne.s32.totalorder %s71, %s73
      %p77 = scmp.eq.s32.totalorder %s16, 0
      %p78 = por %p76, %p77
      %p79 = scmp.ne.s32.totalorder %s71, %s73
      %p80 = scmp.eq.s32.totalorder %s21, 1
      %p81 = por %p79, %p80
      %p82 = scmp.ne.s32.totalorder %s73, %s74
      %p83 = scmp.eq.s32.totalorder %s21, 0
      %p84 = por %p82, %p83
      %p85 = scmp.ne.s32.totalorder %s73, %s74
      %p86 = scmp.eq.s32.totalorder %s22, 1
      %p87 = por %p85, %p86
      %p89 = scmp.ne.s32.totalorder %s74, %s88
      %p90 = scmp.eq.s32.totalorder %s22, 0
      %p91 = por %p89, %p90
      %s93 = sadd.s32 %s92, 1
      %p96 = scmp.eq.s32.totalorder %s16, 1
      %p97 = scmp.ne.s32.totalorder %s92, %s94
      %p98 = scmp.eq.s32.totalorder %s16, 0
      %p99 = por %p97, %p98
      %p100 = scmp.ne.s32.totalorder %s92, %s94
      %p101 = scmp.eq.s32.totalorder %s21, 1
      %p102 = por %p100, %p101
      %p103 = scmp.ne.s32.totalorder %s94, %s95
      %p104 = scmp.eq.s32.totalorder %s21, 0
      %p105 = por %p103, %p104
      %p106 = scmp.ne.s32.totalorder %s94, %s95
      %p107 = scmp.eq.s32.totalorder %s22, 1
      %p108 = por %p106, %p107
      %p110 = scmp.ne.s32.totalorder %s95, %s109
      %p111 = scmp.eq.s32.totalorder %s22, 0
      %p112 = por %p110, %p111
      %s114 = sadd.s32 %s113, 1
      %p117 = scmp.eq.s32.totalorder %s16, 1
      %p118 = scmp.ne.s32.totalorder %s113, %s115
      %p119 = scmp.eq.s32.totalorder %s16, 0
      %p120 = por %p118, %p119
      %p121 = scmp.ne.s32.totalorder %s113, %s115
      %p122 = scmp.eq.s32.totalorder %s21, 1
      %p123 = por %p121, %p122
      %p124 = scmp.ne.s32.totalorder %s115, %s116
      %p125 = scmp.eq.s32.totalorder %s21, 0
      %p126 = por %p124, %p125
      %p127 = scmp.ne.s32.totalorder %s115, %s116
      %p128 = scmp.eq.s32.totalorder %s22, 1
      %p129 = por %p127, %p128
      %p131 = scmp.ne.s32.totalorder %s116, %s130
      %p132 = scmp.eq.s32.totalorder %s22, 0
      %p133 = por %p131, %p132
      %s135 = sadd.s32 %s134, 1
      %p138 = scmp.eq.s32.totalorder %s16, 1
      %p139 = scmp.ne.s32.totalorder %s134, %s136
      %p140 = scmp.eq.s32.totalorder %s16, 0
      %p141 = por %p139, %p140
      %p142 = scmp.ne.s32.totalorder %s134, %s136
      %p143 = scmp.eq.s32.totalorder %s21, 1
      %p144 = por %p142, %p143
      %p145 = scmp.ne.s32.totalorder %s136, %s137
      %p146 = scmp.eq.s32.totalorder %s21, 0
      %p147 = por %p145, %p146
      %p148 = scmp.ne.s32.totalorder %s136, %s137
      %p149 = scmp.eq.s32.totalorder %s22, 1
      %p150 = por %p148, %p149
      %p152 = scmp.ne.s32.totalorder %s137, %s151
      %p153 = scmp.eq.s32.totalorder %s22, 0
      %p154 = por %p152, %p153
      %s155 = ssub.s32 %s16, %s23
      %p156 = scmp.eq.s32.totalorder %s155, 0
      %s158 = sadd.s32 %s157, 1
      %s159 = scalar_select %p156, %s157, %s158
      %p162 = pneg %p156
      %p163 = scmp.eq.s32.totalorder %s16, 1
      %p164 = por %p162, %p163
      %p165 = scmp.ne.s32.totalorder %s157, %s160
      %p166 = scmp.eq.s32.totalorder %s16, 0
      %p167 = por %p165, %p166
      %p168 = scmp.ne.s32.totalorder %s157, %s160
      %p169 = scmp.eq.s32.totalorder %s21, 1
      %p170 = por %p168, %p169
      %p171 = scmp.ne.s32.totalorder %s160, %s161
      %p172 = scmp.eq.s32.totalorder %s21, 0
      %p173 = por %p171, %p172
      %p174 = scmp.ne.s32.totalorder %s160, %s161
      %p175 = scmp.eq.s32.totalorder %s22, 1
      %p176 = por %p174, %p175
      %p178 = scmp.ne.s32.totalorder %s161, %s177
      %p179 = scmp.eq.s32.totalorder %s22, 0
      %p180 = por %p178, %p179
      %p181 = scmp.le.s32.totalorder 1, %s16
      %p182 = scmp.lt.s32.totalorder %s16, 3
      %p183 = pnand %p181, %p182
      %p184 = pneg %p183
      // Predicated region
      $region9: #{tpu_custom_call.1} parent=5 // pred_check
        _
      $region10: #{tpu_custom_call.1} parent=5 // pred_check_branch
        %186 = sbr.rel (%p183) target = $region12
      $region11: #{tpu_custom_call.1} parent=5 // pred_region
        %s187 = ssub.s32 %s16, 1
        // Predicated region
        $region13: #{tpu_custom_call.1} parent=11 // pred_check
          %p188 = pneg %p63
        $region14: #{tpu_custom_call.1} parent=11 // pred_check_branch
          %190 = sbr.rel (%p188) target = $region16
        $region15: #{tpu_custom_call.1} parent=11 // pred_region
          _
        $region16: #{tpu_custom_call.1} parent=11 // pred_fallthru
          _
        // Predicated region
        $region17: #{tpu_custom_call.1} parent=11 // pred_check
          %p191 = pneg %p84
        $region18: #{tpu_custom_call.1} parent=11 // pred_check_branch
          %193 = sbr.rel (%p191) target = $region20
        $region19: #{tpu_custom_call.1} parent=11 // pred_region
          _
        $region20: #{tpu_custom_call.1} parent=11 // pred_fallthru
          _
        // Predicated region
        $region21: #{tpu_custom_call.1} parent=11 // pred_check
          %p194 = pneg %p105
        $region22: #{tpu_custom_call.1} parent=11 // pred_check_branch
          %196 = sbr.rel (%p194) target = $region24
        $region23: #{tpu_custom_call.1} parent=11 // pred_region
          %198 = vsyncadd [#allocation3], 0
          %s199 = sshll.u32 %s3, 4
          %s200 = int_to_ptr.hbm [resolvable:$true] %s199
          %s201 = sshll.u32 [#allocation2], 4
          %s202 = int_to_ptr.vmem [resolvable:$true] %s201
          %207 = dma.hbm_to_vmem [thread:$0]  %s200, 1536, %s202, [#allocation3], 384, 384, 24
        $region24: #{tpu_custom_call.1} parent=11 // pred_fallthru
          _
        // Predicated region
        $region25: #{tpu_custom_call.1} parent=11 // pred_check
          %p208 = pneg %p126
        $region26: #{tpu_custom_call.1} parent=11 // pred_check_branch
          %210 = sbr.rel (%p208) target = $region28
        $region27: #{tpu_custom_call.1} parent=11 // pred_region
          _
        $region28: #{tpu_custom_call.1} parent=11 // pred_fallthru
          _
        // Predicated region
        $region29: #{tpu_custom_call.1} parent=11 // pred_check
          %p211 = pneg %p147
        $region30: #{tpu_custom_call.1} parent=11 // pred_check_branch
          %213 = sbr.rel (%p211) target = $region32
        $region31: #{tpu_custom_call.1} parent=11 // pred_region
          _
        $region32: #{tpu_custom_call.1} parent=11 // pred_fallthru
          _
      $region12: #{tpu_custom_call.1} parent=5 // pred_fallthru
        _
      %p214 = scmp.lt.s32.totalorder %s16, 2
      // Predicated region
      $region33: #{tpu_custom_call.1} parent=5 // pred_check
        %p215 = pneg %p214
      $region34: #{tpu_custom_call.1} parent=5 // pred_check_branch
        %217 = sbr.rel (%p215) target = $region36
      $region35: #{tpu_custom_call.1} parent=5 // pred_region
        // Predicated region
        $region37: #{tpu_custom_call.1} parent=35 // pred_check
          %p218 = pneg %p36
        $region38: #{tpu_custom_call.1} parent=35 // pred_check_branch
          %220 = sbr.rel (%p218) target = $region40
        $region39: #{tpu_custom_call.1} parent=35 // pred_region
          %s221 = smul.u32 2, %s16
          %p222 = scmp.lt.s32.totalorder %s221, 3
          %s223 = scalar_select %p222, %s221, 3
          %s224 = smul.addr %s223, 8
          %s225 = scalar_lea.vmem %s0, %s224
          %s226 = smul.u32 2, %s16
        $region40: #{tpu_custom_call.1} parent=35 // pred_fallthru
          _
      $region36: #{tpu_custom_call.1} parent=5 // pred_fallthru
        _
      %p227 = scmp.le.s32.totalorder 1, %s16
      %p228 = scmp.lt.s32.totalorder %s16, 3
      %p229 = pnand %p227, %p228
      %p230 = pneg %p229
      // Predicated region
      $region41: #{tpu_custom_call.1} parent=5 // pred_check
        _
      $region42: #{tpu_custom_call.1} parent=5 // pred_check_branch
        %232 = sbr.rel (%p229) target = $region44
      $region43: #{tpu_custom_call.1} parent=5 // pred_region
        %s233 = ssub.s32 %s16, 1
        // Predicated region
        $region45: #{tpu_custom_call.1} parent=43 // pred_check
          %p234 = pneg %p105
        $region46: #{tpu_custom_call.1} parent=43 // pred_check_branch
          %236 = sbr.rel (%p234) target = $region48
        $region47: #{tpu_custom_call.1} parent=43 // pred_region
          %238 = dma.done [#allocation3], 1536
        $region48: #{tpu_custom_call.1} parent=43 // pred_fallthru
          _
        %s239 = smul.u32 2, %s21
        %p240 = scmp.lt.s32.totalorder %s239, 3
        %s241 = scalar_select %p240, %s239, 3
        %s242 = smul.addr %s241, 8
        %s243 = scalar_lea.vmem %s0, %s242
        %p244 = pneg %p42
        %p245 = pneg %p39
        %p246 = pneg %p63
        %p247 = pneg %p60
        %p248 = pneg %p84
        %p249 = pneg %p81
        %p250 = pneg %p105
        %p251 = pneg %p102
        %p252 = pneg %p126
        %p253 = pneg %p123
        %p254 = pneg %p147
        %p255 = pneg %p144
        %p256 = pneg %p173
        %p257 = pneg %p170
        %s258 = sand.u32 %s160, 1
        %s259 = scalar_lea.sflag [#allocation4], %s258
        %s260 = sand.u32 %s160, 1
        %s261 = smul.addr %s260, 16
        %s262 = scalar_lea.vmem [#allocation5], %s261
        %s263 = smul.u32 2, %s21
        %p264 = scmp.lt.s32.totalorder %s263, 3
        %s265 = scalar_select %p264, %s263, 3
        %s266 = smul.addr %s265, 8
        %s267 = scalar_lea.vmem %s0, %s266
        %s268 = smul.u32 2, %s21
        %s269 = smul.u32 2, %s21
        %v270 = vlaneseq
        %v271 = vshrl.u32 %v270, 7
        %v272 = vlaneseq
        %v273 = vand.u32 %v272, 127
        %vm274 = vcmp.le.s32.totalorder %v273, %v271
        %v275 = vsel %vm274, 0.0, -1e+30
        %v276 = vld [vmem:[%s267] sm:$0xff]
        %v277 = vld [vmem:[%s267 + $0x8] sm:$0xff]
        %v278 = vld [vmem:[%s2] sm:$0xff]
        %v279 = vld [vmem:[%s2 + $0x8] sm:$0xff]
        %v280 = vld [vmem:[%s5] sm:$0x1]
        %v282 = vperm.slane %v280, 0
        %vm284 = vcmask 130048
        %v286 = vsel %vm284, %v276, 0
        %v289 = vsel %vm284, %v277, 0
        %291 = vmatpush.msra.mxu0 0.0
        %292 = vmatpush.msra.mxu0 0.0
        %293 = vmatpush.msra.mxu0 0.0
        %294 = vmatpush.msra.mxu0 0.0
        %295 = vmatpush.msra.mxu0 0.0
        %296 = vmatpush.msra.mxu0 0.0
        %297 = vmatpush.msra.mxu0 0.0
        %298 = vmatpush.msra.mxu0 0.0
        %299 = vmatpush.msra.mxu0 0.0
        %300 = vmatpush.msra.mxu0 0.0
        %301 = vmatpush.msra.mxu0 0.0
        %302 = vmatpush.msra.mxu0 0.0
        %303 = vmatpush.msra.mxu0 0.0
        %304 = vmatpush.msra.mxu0 0.0
        %305 = vmatpush.msra.mxu0 %v279
        %306 = vmatpush.msra.mxu0 %v278
        %307 = vmatmul.f32.gmra.mxu0 %v286
        %v308 = vpop.f32.mrf.mxu0
        %v309 = vadd.f32 %v282, %v308
        %310 = vmatmul.f32.gmra.mxu0 %v289
        %v311 = vpop.f32.mrf.mxu0
        %v312 = vadd.f32 %v282, %v311
        %313 = vdwg.mxu0
        %v314 = vld [vmem:[%s1] sm:$0xff]
        %v315 = vadd.f32 %v309, %v314
        %v316 = vadd.f32 %v312, %v314
        %v317 = vld [vmem:[#allocation2] sm:$0xff]
        %v318 = vld [vmem:[#allocation2 + $0x18] sm:$0xff]
        %v319 = vld [vmem:[#allocation2 + $0x30] sm:$0xff]
        %v320 = vld [vmem:[#allocation2 + $0x48] sm:$0xff]
        %321 = vrot.lane.b32.xlu0 %v282, 96
        %v322 = vpop.permute.xlu0 %321
        %vm324 = vcmask 261120
        %v326 = vsel %vm324, %v315, 0
        %v329 = vsel %vm324, %v316, 0
        %331 = vmatpush.msra.mxu0 0.0
        %332 = vmatpush.msra.mxu0 0.0
        %333 = vmatpush.msra.mxu0 0.0
        %334 = vmatpush.msra.mxu0 0.0
        %335 = vmatpush.msra.mxu0 0.0
        %336 = vmatpush.msra.mxu0 0.0
        %337 = vmatpush.msra.mxu0 0.0
        %338 = vmatpush.msra.mxu0 0.0
        %339 = vmatpush.msra.mxu0 0.0
        %340 = vmatpush.msra.mxu0 0.0
        %341 = vmatpush.msra.mxu0 0.0
        %342 = vmatpush.msra.mxu0 0.0
        %343 = vmatpush.msra.mxu0 %v320
        %344 = vmatpush.msra.mxu0 %v319
        %345 = vmatpush.msra.mxu0 %v318
        %346 = vmatpush.msra.mxu0 %v317
        %347 = vmatmul.f32.gmra.mxu0 %v326
        %v348 = vpop.f32.mrf.mxu0
        %v349 = vadd.f32 %v322, %v348
        %350 = vmatmul.f32.gmra.mxu0 %v329
        %v351 = vpop.f32.mrf.mxu0
        %v352 = vadd.f32 %v322, %v351
        %353 = vdwg.mxu0
        %v354 = vld [vmem:[%s5 + $0x1] sm:$0x1]
        %v355 = vmul.f32 %v349, 0.35355338
        %v356 = vmul.f32 %v352, 0.35355338
        %359 = vrot.lane.b32.xlu0 %v355, 120
        %v360 = vpop.permute.xlu0 %359
        %361 = vrot.lane.b32.xlu0 %v356, 120
        %v362 = vpop.permute.xlu0 %361
        %363 = vrot.lane.b32.xlu0 %v355, 112
        %v364 = vpop.permute.xlu0 %363
        %365 = vrot.lane.b32.xlu0 %v356, 112
        %v366 = vpop.permute.xlu0 %365
        %367 = vrot.lane.b32.xlu0 %v355, 104
        %v368 = vpop.permute.xlu0 %367
        %369 = vrot.lane.b32.xlu0 %v356, 104
        %v370 = vpop.permute.xlu0 %369
        %373 = vrot.lane.b32.xlu0 %v349, 120
        %v374 = vpop.permute.xlu0 %373
        %375 = vrot.lane.b32.xlu0 %v352, 120
        %v376 = vpop.permute.xlu0 %375
        %377 = vrot.lane.b32.xlu0 %v349, 112
        %v378 = vpop.permute.xlu0 %377
        %379 = vrot.lane.b32.xlu0 %v352, 112
        %v380 = vpop.permute.xlu0 %379
        %381 = vrot.lane.b32.xlu0 %v349, 104
        %v382 = vpop.permute.xlu0 %381
        %383 = vrot.lane.b32.xlu0 %v352, 104
        %v384 = vpop.permute.xlu0 %383
        %385 = vrot.lane.b32.xlu0 %v349, 96
        %v386 = vpop.permute.xlu0 %385
        %vm387 = vcmask 64512
        %v388 = vsel %vm387, %v355, 0
        %v390 = vsel %vm387, %v386, 0
        %392 = vmatpush.xpose.msra.mxu0 0.0
        %393 = vmatpush.xpose.msra.mxu0 0.0
        %394 = vmatpush.xpose.msra.mxu0 0.0
        %395 = vmatpush.xpose.msra.mxu0 0.0
        %396 = vmatpush.xpose.msra.mxu0 0.0
        %397 = vmatpush.xpose.msra.mxu0 0.0
        %398 = vmatpush.xpose.msra.mxu0 0.0
        %399 = vmatpush.xpose.msra.mxu0 0.0
        %400 = vmatpush.xpose.msra.mxu0 0.0
        %401 = vmatpush.xpose.msra.mxu0 0.0
        %402 = vmatpush.xpose.msra.mxu0 0.0
        %403 = vmatpush.xpose.msra.mxu0 0.0
        %404 = vmatpush.xpose.msra.mxu0 0.0
        %405 = vmatpush.xpose.msra.mxu0 0.0
        %406 = vmatpush.xpose.msra.mxu0 0.0
        %407 = vmatpush.xpose.msra.mxu0 %v390
        %408 = vmatmul.f32.gmra.mxu0 %v388
        %v409 = vpop.f32.mrf.mxu0
        %v410 = vadd.f32 %v275, %v409
        %411 = vdwg.mxu0
        %412 = vrot.lane.b32.xlu0 %v352, 96
        %v413 = vpop.permute.xlu0 %412
        %v414 = vsel %vm387, %v356, 0
        %v416 = vsel %vm387, %v413, 0
        %418 = vmatpush.xpose.msra.mxu0 0.0
        %419 = vmatpush.xpose.msra.mxu0 0.0
        %420 = vmatpush.xpose.msra.mxu0 0.0
        %421 = vmatpush.xpose.msra.mxu0 0.0
        %422 = vmatpush.xpose.msra.mxu0 0.0
        %423 = vmatpush.xpose.msra.mxu0 0.0
        %424 = vmatpush.xpose.msra.mxu0 0.0
        %425 = vmatpush.xpose.msra.mxu0 0.0
        %426 = vmatpush.xpose.msra.mxu0 0.0
        %427 = vmatpush.xpose.msra.mxu0 0.0
        %428 = vmatpush.xpose.msra.mxu0 0.0
        %429 = vmatpush.xpose.msra.mxu0 0.0
        %430 = vmatpush.xpose.msra.mxu0 0.0
        %431 = vmatpush.xpose.msra.mxu0 0.0
        %432 = vmatpush.xpose.msra.mxu0 0.0
        %433 = vmatpush.xpose.msra.mxu0 %v416
        %434 = vmatmul.f32.gmra.mxu0 %v414
        %v435 = vpop.f32.mrf.mxu0
        %v436 = vadd.f32 %v275, %v435
        %437 = vdwg.mxu0
        %438 = vrot.lane.b32.xlu0 %v374, 96
        %v439 = vpop.permute.xlu0 %438
        %v440 = vsel %vm387, %v360, 0
        %v442 = vsel %vm387, %v439, 0
        %444 = vmatpush.xpose.msra.mxu0 0.0
        %445 = vmatpush.xpose.msra.mxu0 0.0
        %446 = vmatpush.xpose.msra.mxu0 0.0
        %447 = vmatpush.xpose.msra.mxu0 0.0
        %448 = vmatpush.xpose.msra.mxu0 0.0
        %449 = vmatpush.xpose.msra.mxu0 0.0
        %450 = vmatpush.xpose.msra.mxu0 0.0
        %451 = vmatpush.xpose.msra.mxu0 0.0
        %452 = vmatpush.xpose.msra.mxu0 0.0
        %453 = vmatpush.xpose.msra.mxu0 0.0
        %454 = vmatpush.xpose.msra.mxu0 0.0
        %455 = vmatpush.xpose.msra.mxu0 0.0
        %456 = vmatpush.xpose.msra.mxu0 0.0
        %457 = vmatpush.xpose.msra.mxu0 0.0
        %458 = vmatpush.xpose.msra.mxu0 0.0
        %459 = vmatpush.xpose.msra.mxu0 %v442
        %460 = vmatmul.f32.gmra.mxu0 %v440
        %v461 = vpop.f32.mrf.mxu0
        %v462 = vadd.f32 %v275, %v461
        %463 = vdwg.mxu0
        %464 = vrot.lane.b32.xlu0 %v376, 96
        %v465 = vpop.permute.xlu0 %464
        %v466 = vsel %vm387, %v362, 0
        %v468 = vsel %vm387, %v465, 0
        %470 = vmatpush.xpose.msra.mxu0 0.0
        %471 = vmatpush.xpose.msra.mxu0 0.0
        %472 = vmatpush.xpose.msra.mxu0 0.0
        %473 = vmatpush.xpose.msra.mxu0 0.0
        %474 = vmatpush.xpose.msra.mxu0 0.0
        %475 = vmatpush.xpose.msra.mxu0 0.0
        %476 = vmatpush.xpose.msra.mxu0 0.0
        %477 = vmatpush.xpose.msra.mxu0 0.0
        %478 = vmatpush.xpose.msra.mxu0 0.0
        %479 = vmatpush.xpose.msra.mxu0 0.0
        %480 = vmatpush.xpose.msra.mxu0 0.0
        %481 = vmatpush.xpose.msra.mxu0 0.0
        %482 = vmatpush.xpose.msra.mxu0 0.0
        %483 = vmatpush.xpose.msra.mxu0 0.0
        %484 = vmatpush.xpose.msra.mxu0 0.0
        %485 = vmatpush.xpose.msra.mxu0 %v468
        %486 = vmatmul.f32.gmra.mxu0 %v466
        %v487 = vpop.f32.mrf.mxu0
        %v488 = vadd.f32 %v275, %v487
        %489 = vdwg.mxu0
        %490 = vrot.lane.b32.xlu0 %v378, 96
        %v491 = vpop.permute.xlu0 %490
        %v492 = vsel %vm387, %v364, 0
        %v494 = vsel %vm387, %v491, 0
        %496 = vmatpush.xpose.msra.mxu0 0.0
        %497 = vmatpush.xpose.msra.mxu0 0.0
        %498 = vmatpush.xpose.msra.mxu0 0.0
        %499 = vmatpush.xpose.msra.mxu0 0.0
        %500 = vmatpush.xpose.msra.mxu0 0.0
        %501 = vmatpush.xpose.msra.mxu0 0.0
        %502 = vmatpush.xpose.msra.mxu0 0.0
        %503 = vmatpush.xpose.msra.mxu0 0.0
        %504 = vmatpush.xpose.msra.mxu0 0.0
        %505 = vmatpush.xpose.msra.mxu0 0.0
        %506 = vmatpush.xpose.msra.mxu0 0.0
        %507 = vmatpush.xpose.msra.mxu0 0.0
        %508 = vmatpush.xpose.msra.mxu0 0.0
        %509 = vmatpush.xpose.msra.mxu0 0.0
        %510 = vmatpush.xpose.msra.mxu0 0.0
        %511 = vmatpush.xpose.msra.mxu0 %v494
        %512 = vmatmul.f32.gmra.mxu0 %v492
        %v513 = vpop.f32.mrf.mxu0
        %v514 = vadd.f32 %v275, %v513
        %515 = vdwg.mxu0
        %516 = vrot.lane.b32.xlu0 %v380, 96
        %v517 = vpop.permute.xlu0 %516
        %v518 = vsel %vm387, %v366, 0
        %v520 = vsel %vm387, %v517, 0
        %522 = vmatpush.xpose.msra.mxu0 0.0
        %523 = vmatpush.xpose.msra.mxu0 0.0
        %524 = vmatpush.xpose.msra.mxu0 0.0
        %525 = vmatpush.xpose.msra.mxu0 0.0
        %526 = vmatpush.xpose.msra.mxu0 0.0
        %527 = vmatpush.xpose.msra.mxu0 0.0
        %528 = vmatpush.xpose.msra.mxu0 0.0
        %529 = vmatpush.xpose.msra.mxu0 0.0
        %530 = vmatpush.xpose.msra.mxu0 0.0
        %531 = vmatpush.xpose.msra.mxu0 0.0
        %532 = vmatpush.xpose.msra.mxu0 0.0
        %533 = vmatpush.xpose.msra.mxu0 0.0
        %534 = vmatpush.xpose.msra.mxu0 0.0
        %535 = vmatpush.xpose.msra.mxu0 0.0
        %536 = vmatpush.xpose.msra.mxu0 0.0
        %537 = vmatpush.xpose.msra.mxu0 %v520
        %538 = vmatmul.f32.gmra.mxu0 %v518
        %v539 = vpop.f32.mrf.mxu0
        %v540 = vadd.f32 %v275, %v539
        %541 = vdwg.mxu0
        %542 = vrot.lane.b32.xlu0 %v382, 96
        %v543 = vpop.permute.xlu0 %542
        %v544 = vsel %vm387, %v368, 0
        %v546 = vsel %vm387, %v543, 0
        %548 = vmatpush.xpose.msra.mxu0 0.0
        %549 = vmatpush.xpose.msra.mxu0 0.0
        %550 = vmatpush.xpose.msra.mxu0 0.0
        %551 = vmatpush.xpose.msra.mxu0 0.0
        %552 = vmatpush.xpose.msra.mxu0 0.0
        %553 = vmatpush.xpose.msra.mxu0 0.0
        %554 = vmatpush.xpose.msra.mxu0 0.0
        %555 = vmatpush.xpose.msra.mxu0 0.0
        %556 = vmatpush.xpose.msra.mxu0 0.0
        %557 = vmatpush.xpose.msra.mxu0 0.0
        %558 = vmatpush.xpose.msra.mxu0 0.0
        %559 = vmatpush.xpose.msra.mxu0 0.0
        %560 = vmatpush.xpose.msra.mxu0 0.0
        %561 = vmatpush.xpose.msra.mxu0 0.0
        %562 = vmatpush.xpose.msra.mxu0 0.0
        %563 = vmatpush.xpose.msra.mxu0 %v546
        %564 = vmatmul.f32.gmra.mxu0 %v544
        %v565 = vpop.f32.mrf.mxu0
        %v566 = vadd.f32 %v275, %v565
        %567 = vdwg.mxu0
        %568 = vrot.lane.b32.xlu0 %v384, 96
        %v569 = vpop.permute.xlu0 %568
        %v570 = vsel %vm387, %v370, 0
        %v572 = vsel %vm387, %v569, 0
        %574 = vmatpush.xpose.msra.mxu0 0.0
        %575 = vmatpush.xpose.msra.mxu0 0.0
        %576 = vmatpush.xpose.msra.mxu0 0.0
        %577 = vmatpush.xpose.msra.mxu0 0.0
        %578 = vmatpush.xpose.msra.mxu0 0.0
        %579 = vmatpush.xpose.msra.mxu0 0.0
        %580 = vmatpush.xpose.msra.mxu0 0.0
        %581 = vmatpush.xpose.msra.mxu0 0.0
        %582 = vmatpush.xpose.msra.mxu0 0.0
        %583 = vmatpush.xpose.msra.mxu0 0.0
        %584 = vmatpush.xpose.msra.mxu0 0.0
        %585 = vmatpush.xpose.msra.mxu0 0.0
        %586 = vmatpush.xpose.msra.mxu0 0.0
        %587 = vmatpush.xpose.msra.mxu0 0.0
        %588 = vmatpush.xpose.msra.mxu0 0.0
        %589 = vmatpush.xpose.msra.mxu0 %v572
        %590 = vmatmul.f32.gmra.mxu0 %v570
        %v591 = vpop.f32.mrf.mxu0
        %v592 = vadd.f32 %v275, %v591
        %593 = vdwg.mxu0
        %v594 = vsel %vm387, %v410, -inf
        %595 = vmax.xlane.f32.xlu0 %v594
        %v596 = vpop.xlane.xlu0 %595
        %v597 = vsel %vm387, %v436, -inf
        %598 = vmax.xlane.f32.xlu0 %v597
        %v599 = vpop.xlane.xlu0 %598
        %v600 = vsel %vm387, %v462, -inf
        %601 = vmax.xlane.f32.xlu0 %v600
        %v602 = vpop.xlane.xlu0 %601
        %v603 = vsel %vm387, %v488, -inf
        %604 = vmax.xlane.f32.xlu0 %v603
        %v605 = vpop.xlane.xlu0 %604
        %v606 = vsel %vm387, %v514, -inf
        %607 = vmax.xlane.f32.xlu0 %v606
        %v608 = vpop.xlane.xlu0 %607
        %v609 = vsel %vm387, %v540, -inf
        %610 = vmax.xlane.f32.xlu0 %v609
        %v611 = vpop.xlane.xlu0 %610
        %v612 = vsel %vm387, %v566, -inf
        %613 = vmax.xlane.f32.xlu0 %v612
        %v614 = vpop.xlane.xlu0 %613
        %v615 = vsel %vm387, %v592, -inf
        %616 = vmax.xlane.f32.xlu0 %v615
        %v617 = vpop.xlane.xlu0 %616
        %v618 = vsub.f32 %v410, %v596
        %v619 = vsub.f32 %v436, %v599
        %v620 = vsub.f32 %v462, %v602
        %v621 = vsub.f32 %v488, %v605
        %v622 = vsub.f32 %v514, %v608
        %v623 = vsub.f32 %v540, %v611
        %v624 = vsub.f32 %v566, %v614
        %v625 = vsub.f32 %v592, %v617
        %v626 = vmul.f32 %v618, 1.442695
        %v627 = vpow.pop %v626
        %v628 = vmul.f32 %v619, 1.442695
        %v629 = vpow.pop %v628
        %v630 = vmul.f32 %v620, 1.442695
        %v631 = vpow.pop %v630
        %v632 = vmul.f32 %v621, 1.442695
        %v633 = vpow.pop %v632
        %v634 = vmul.f32 %v622, 1.442695
        %v635 = vpow.pop %v634
        %v636 = vmul.f32 %v623, 1.442695
        %v637 = vpow.pop %v636
        %v638 = vmul.f32 %v624, 1.442695
        %v639 = vpow.pop %v638
        %v640 = vmul.f32 %v625, 1.442695
        %v641 = vpow.pop %v640
        %v642 = vsel %vm387, %v627, 0.0
        %643 = vadd.xlane.f32.xlu0 %v642
        %v644 = vpop.xlane.xlu0 %643
        %v645 = vsel %vm387, %v629, 0.0
        %646 = vadd.xlane.f32.xlu0 %v645
        %v647 = vpop.xlane.xlu0 %646
        %v648 = vsel %vm387, %v631, 0.0
        %649 = vadd.xlane.f32.xlu0 %v648
        %v650 = vpop.xlane.xlu0 %649
        %v651 = vsel %vm387, %v633, 0.0
        %652 = vadd.xlane.f32.xlu0 %v651
        %v653 = vpop.xlane.xlu0 %652
        %v654 = vsel %vm387, %v635, 0.0
        %655 = vadd.xlane.f32.xlu0 %v654
        %v656 = vpop.xlane.xlu0 %655
        %v657 = vsel %vm387, %v637, 0.0
        %658 = vadd.xlane.f32.xlu0 %v657
        %v659 = vpop.xlane.xlu0 %658
        %v660 = vsel %vm387, %v639, 0.0
        %661 = vadd.xlane.f32.xlu0 %v660
        %v662 = vpop.xlane.xlu0 %661
        %v663 = vsel %vm387, %v641, 0.0
        %664 = vadd.xlane.f32.xlu0 %v663
        %v665 = vpop.xlane.xlu0 %664
        %v666 = vrcp.pop %v644
        %v667 = vrcp.pop %v647
        %v668 = vrcp.pop %v650
        %v669 = vrcp.pop %v653
        %v670 = vrcp.pop %v656
        %v671 = vrcp.pop %v659
        %v672 = vrcp.pop %v662
        %v673 = vrcp.pop %v665
        %v674 = vmul.f32 %v627, %v666
        %v675 = vmul.f32 %v629, %v667
        %v676 = vmul.f32 %v631, %v668
        %v677 = vmul.f32 %v633, %v669
        %v678 = vmul.f32 %v635, %v670
        %v679 = vmul.f32 %v637, %v671
        %v680 = vmul.f32 %v639, %v672
        %v681 = vmul.f32 %v641, %v673
        %682 = vrot.lane.b32.xlu0 %v349, 64
        %v683 = vpop.permute.xlu0 %682
        %v686 = vsel %vm387, %v674, 0
        %688 = vmatpush.msra.mxu0 0.0
        %689 = vmatpush.msra.mxu0 0.0
        %690 = vmatpush.msra.mxu0 0.0
        %691 = vmatpush.msra.mxu0 0.0
        %692 = vmatpush.msra.mxu0 0.0
        %693 = vmatpush.msra.mxu0 0.0
        %694 = vmatpush.msra.mxu0 0.0
        %695 = vmatpush.msra.mxu0 0.0
        %696 = vmatpush.msra.mxu0 0.0
        %697 = vmatpush.msra.mxu0 0.0
        %698 = vmatpush.msra.mxu0 0.0
        %699 = vmatpush.msra.mxu0 0.0
        %700 = vmatpush.msra.mxu0 0.0
        %701 = vmatpush.msra.mxu0 0.0
        %702 = vmatpush.msra.mxu0 0.0
        %703 = vmatpush.msra.mxu0 %v683
        %704 = vmatmul.f32.gmra.mxu0 %v686
        %v705 = vpop.f32.mrf.mxu0
        %v706 = vadd.f32 0.0, %v705
        %707 = vdwg.mxu0
        %708 = vrot.lane.b32.xlu0 %v352, 64
        %v709 = vpop.permute.xlu0 %708
        %v712 = vsel %vm387, %v675, 0
        %714 = vmatpush.msra.mxu0 0.0
        %715 = vmatpush.msra.mxu0 0.0
        %716 = vmatpush.msra.mxu0 0.0
        %717 = vmatpush.msra.mxu0 0.0
        %718 = vmatpush.msra.mxu0 0.0
        %719 = vmatpush.msra.mxu0 0.0
        %720 = vmatpush.msra.mxu0 0.0
        %721 = vmatpush.msra.mxu0 0.0
        %722 = vmatpush.msra.mxu0 0.0
        %723 = vmatpush.msra.mxu0 0.0
        %724 = vmatpush.msra.mxu0 0.0
        %725 = vmatpush.msra.mxu0 0.0
        %726 = vmatpush.msra.mxu0 0.0
        %727 = vmatpush.msra.mxu0 0.0
        %728 = vmatpush.msra.mxu0 0.0
        %729 = vmatpush.msra.mxu0 %v709
        %730 = vmatmul.f32.gmra.mxu0 %v712
        %v731 = vpop.f32.mrf.mxu0
        %v732 = vadd.f32 0.0, %v731
        %733 = vdwg.mxu0
        %734 = vrot.lane.b32.xlu0 %v374, 64
        %v735 = vpop.permute.xlu0 %734
        %v738 = vsel %vm387, %v676, 0
        %740 = vmatpush.msra.mxu0 0.0
        %741 = vmatpush.msra.mxu0 0.0
        %742 = vmatpush.msra.mxu0 0.0
        %743 = vmatpush.msra.mxu0 0.0
        %744 = vmatpush.msra.mxu0 0.0
        %745 = vmatpush.msra.mxu0 0.0
        %746 = vmatpush.msra.mxu0 0.0
        %747 = vmatpush.msra.mxu0 0.0
        %748 = vmatpush.msra.mxu0 0.0
        %749 = vmatpush.msra.mxu0 0.0
        %750 = vmatpush.msra.mxu0 0.0
        %751 = vmatpush.msra.mxu0 0.0
        %752 = vmatpush.msra.mxu0 0.0
        %753 = vmatpush.msra.mxu0 0.0
        %754 = vmatpush.msra.mxu0 0.0
        %755 = vmatpush.msra.mxu0 %v735
        %756 = vmatmul.f32.gmra.mxu0 %v738
        %v757 = vpop.f32.mrf.mxu0
        %v758 = vadd.f32 0.0, %v757
        %759 = vdwg.mxu0
        %760 = vrot.lane.b32.xlu0 %v376, 64
        %v761 = vpop.permute.xlu0 %760
        %v764 = vsel %vm387, %v677, 0
        %766 = vmatpush.msra.mxu0 0.0
        %767 = vmatpush.msra.mxu0 0.0
        %768 = vmatpush.msra.mxu0 0.0
        %769 = vmatpush.msra.mxu0 0.0
        %770 = vmatpush.msra.mxu0 0.0
        %771 = vmatpush.msra.mxu0 0.0
        %772 = vmatpush.msra.mxu0 0.0
        %773 = vmatpush.msra.mxu0 0.0
        %774 = vmatpush.msra.mxu0 0.0
        %775 = vmatpush.msra.mxu0 0.0
        %776 = vmatpush.msra.mxu0 0.0
        %777 = vmatpush.msra.mxu0 0.0
        %778 = vmatpush.msra.mxu0 0.0
        %779 = vmatpush.msra.mxu0 0.0
        %780 = vmatpush.msra.mxu0 0.0
        %781 = vmatpush.msra.mxu0 %v761
        %782 = vmatmul.f32.gmra.mxu0 %v764
        %v783 = vpop.f32.mrf.mxu0
        %v784 = vadd.f32 0.0, %v783
        %785 = vdwg.mxu0
        %786 = vrot.lane.b32.xlu0 %v378, 64
        %v787 = vpop.permute.xlu0 %786
        %v790 = vsel %vm387, %v678, 0
        %792 = vmatpush.msra.mxu0 0.0
        %793 = vmatpush.msra.mxu0 0.0
        %794 = vmatpush.msra.mxu0 0.0
        %795 = vmatpush.msra.mxu0 0.0
        %796 = vmatpush.msra.mxu0 0.0
        %797 = vmatpush.msra.mxu0 0.0
        %798 = vmatpush.msra.mxu0 0.0
        %799 = vmatpush.msra.mxu0 0.0
        %800 = vmatpush.msra.mxu0 0.0
        %801 = vmatpush.msra.mxu0 0.0
        %802 = vmatpush.msra.mxu0 0.0
        %803 = vmatpush.msra.mxu0 0.0
        %804 = vmatpush.msra.mxu0 0.0
        %805 = vmatpush.msra.mxu0 0.0
        %806 = vmatpush.msra.mxu0 0.0
        %807 = vmatpush.msra.mxu0 %v787
        %808 = vmatmul.f32.gmra.mxu0 %v790
        %v809 = vpop.f32.mrf.mxu0
        %v810 = vadd.f32 0.0, %v809
        %811 = vdwg.mxu0
        %812 = vrot.lane.b32.xlu0 %v380, 64
        %v813 = vpop.permute.xlu0 %812
        %v816 = vsel %vm387, %v679, 0
        %818 = vmatpush.msra.mxu0 0.0
        %819 = vmatpush.msra.mxu0 0.0
        %820 = vmatpush.msra.mxu0 0.0
        %821 = vmatpush.msra.mxu0 0.0
        %822 = vmatpush.msra.mxu0 0.0
        %823 = vmatpush.msra.mxu0 0.0
        %824 = vmatpush.msra.mxu0 0.0
        %825 = vmatpush.msra.mxu0 0.0
        %826 = vmatpush.msra.mxu0 0.0
        %827 = vmatpush.msra.mxu0 0.0
        %828 = vmatpush.msra.mxu0 0.0
        %829 = vmatpush.msra.mxu0 0.0
        %830 = vmatpush.msra.mxu0 0.0
        %831 = vmatpush.msra.mxu0 0.0
        %832 = vmatpush.msra.mxu0 0.0
        %833 = vmatpush.msra.mxu0 %v813
        %834 = vmatmul.f32.gmra.mxu0 %v816
        %v835 = vpop.f32.mrf.mxu0
        %v836 = vadd.f32 0.0, %v835
        %837 = vdwg.mxu0
        %838 = vrot.lane.b32.xlu0 %v382, 64
        %v839 = vpop.permute.xlu0 %838
        %v842 = vsel %vm387, %v680, 0
        %844 = vmatpush.msra.mxu0 0.0
        %845 = vmatpush.msra.mxu0 0.0
        %846 = vmatpush.msra.mxu0 0.0
        %847 = vmatpush.msra.mxu0 0.0
        %848 = vmatpush.msra.mxu0 0.0
        %849 = vmatpush.msra.mxu0 0.0
        %850 = vmatpush.msra.mxu0 0.0
        %851 = vmatpush.msra.mxu0 0.0
        %852 = vmatpush.msra.mxu0 0.0
        %853 = vmatpush.msra.mxu0 0.0
        %854 = vmatpush.msra.mxu0 0.0
        %855 = vmatpush.msra.mxu0 0.0
        %856 = vmatpush.msra.mxu0 0.0
        %857 = vmatpush.msra.mxu0 0.0
        %858 = vmatpush.msra.mxu0 0.0
        %859 = vmatpush.msra.mxu0 %v839
        %860 = vmatmul.f32.gmra.mxu0 %v842
        %v861 = vpop.f32.mrf.mxu0
        %v862 = vadd.f32 0.0, %v861
        %863 = vdwg.mxu0
        %864 = vrot.lane.b32.xlu0 %v384, 64
        %v865 = vpop.permute.xlu0 %864
        %v868 = vsel %vm387, %v681, 0
        %870 = vmatpush.msra.mxu0 0.0
        %871 = vmatpush.msra.mxu0 0.0
        %872 = vmatpush.msra.mxu0 0.0
        %873 = vmatpush.msra.mxu0 0.0
        %874 = vmatpush.msra.mxu0 0.0
        %875 = vmatpush.msra.mxu0 0.0
        %876 = vmatpush.msra.mxu0 0.0
        %877 = vmatpush.msra.mxu0 0.0
        %878 = vmatpush.msra.mxu0 0.0
        %879 = vmatpush.msra.mxu0 0.0
        %880 = vmatpush.msra.mxu0 0.0
        %881 = vmatpush.msra.mxu0 0.0
        %882 = vmatpush.msra.mxu0 0.0
        %883 = vmatpush.msra.mxu0 0.0
        %884 = vmatpush.msra.mxu0 0.0
        %885 = vmatpush.msra.mxu0 %v865
        %886 = vmatmul.f32.gmra.mxu0 %v868
        %v887 = vpop.f32.mrf.mxu0
        %v888 = vadd.f32 0.0, %v887
        %889 = vdwg.mxu0
        %892 = vrot.lane.b32.xlu0 %v758, 8
        %v893 = vpop.permute.xlu0 %892
        %894 = vrot.lane.b32.xlu0 %v784, 8
        %v895 = vpop.permute.xlu0 %894
        %900 = vrot.lane.b32.xlu0 %v810, 16
        %v901 = vpop.permute.xlu0 %900
        %902 = vrot.lane.b32.xlu0 %v836, 16
        %v903 = vpop.permute.xlu0 %902
        %908 = vrot.lane.b32.xlu0 %v862, 24
        %v909 = vpop.permute.xlu0 %908
        %910 = vrot.lane.b32.xlu0 %v888, 24
        %v911 = vpop.permute.xlu0 %910
        %v914 = vsel %vm387, %v706, %v893
        %v915 = vsel %vm387, %v732, %v895
        %v916 = vsel %vm284, %v914, %v901
        %v917 = vsel %vm284, %v915, %v903
        %vm918 = vcmask 195584
        %v919 = vsel %vm918, %v916, %v909
        %v920 = vsel %vm918, %v917, %v911
        %v922 = vperm.slane %v354, 0
        %928 = vrot.lane.b32.xlu0 %v317, 32
        %v929 = vpop.permute.xlu0 %928
        %930 = vrot.lane.b32.xlu0 %v318, 32
        %v931 = vpop.permute.xlu0 %930
        %932 = vrot.lane.b32.xlu0 %v319, 32
        %v933 = vpop.permute.xlu0 %932
        %934 = vrot.lane.b32.xlu0 %v320, 32
        %v935 = vpop.permute.xlu0 %934
        %v941 = vsel %vm324, %v919, 0
        %v944 = vsel %vm324, %v920, 0
        %946 = vmatpush.msra.mxu0 0.0
        %947 = vmatpush.msra.mxu0 0.0
        %948 = vmatpush.msra.mxu0 0.0
        %949 = vmatpush.msra.mxu0 0.0
        %950 = vmatpush.msra.mxu0 0.0
        %951 = vmatpush.msra.mxu0 0.0
        %952 = vmatpush.msra.mxu0 0.0
        %953 = vmatpush.msra.mxu0 0.0
        %954 = vmatpush.msra.mxu0 0.0
        %955 = vmatpush.msra.mxu0 0.0
        %956 = vmatpush.msra.mxu0 0.0
        %957 = vmatpush.msra.mxu0 0.0
        %958 = vmatpush.msra.mxu0 %v935
        %959 = vmatpush.msra.mxu0 %v933
        %960 = vmatpush.msra.mxu0 %v931
        %961 = vmatpush.msra.mxu0 %v929
        %962 = vmatmul.f32.gmra.mxu0 %v941
        %v963 = vpop.f32.mrf.mxu0
        %v964 = vadd.f32 %v922, %v963
        %965 = vmatmul.f32.gmra.mxu0 %v944
        %v966 = vpop.f32.mrf.mxu0
        %v967 = vadd.f32 %v922, %v966
        %968 = vdwg.mxu0
        %v969 = vadd.f32 %v315, %v964
        %v970 = vadd.f32 %v316, %v967
        %v971 = vld [vmem:[%s5 + $0x2] sm:$0x1]
        %v972 = vsel %vm324, %v969, 0.0
        %973 = vadd.xlane.f32.xlu0 %v972
        %v974 = vpop.xlane.xlu0 %973
        %v975 = vsel %vm324, %v970, 0.0
        %976 = vadd.xlane.f32.xlu0 %v975
        %v977 = vpop.xlane.xlu0 %976
        %v978 = vrcp.pop 32.0
        %v979 = vmul.f32 32.0, %v978
        %v980 = vsub.f32 1.0, %v979
        %v981 = vmul.f32 %v978, %v980
        %v982 = vadd.f32 %v978, %v981
        %vm983 = vweird.f32 %v978
        %v984 = vsel %vm983, %v978, %v982
        %v985 = vmul.f32 %v974, %v984
        %v986 = vmul.f32 %v977, %v984
        %v987 = vsub.f32 %v969, %v985
        %v988 = vsub.f32 %v970, %v986
        %v989 = vmul.f32 %v987, %v987
        %v990 = vmul.f32 %v988, %v988
        %v991 = vsel %vm324, %v989, 0.0
        %992 = vadd.xlane.f32.xlu0 %v991
        %v993 = vpop.xlane.xlu0 %992
        %v994 = vsel %vm324, %v990, 0.0
        %995 = vadd.xlane.f32.xlu0 %v994
        %v996 = vpop.xlane.xlu0 %995
        %v997 = vmul.f32 %v993, %v984
        %v998 = vmul.f32 %v996, %v984
        %v999 = vadd.f32 %v997, 1e-05
        %v1000 = vadd.f32 %v998, 1e-05
        %v1001 = vrsqrt.pop %v999
        %v1002 = vmul.f32 %v1001, %v999
        %v1003 = vmul.f32 %v1002, %v1001
        %v1004 = vmul.f32 0.5, %v1003
        %v1005 = vsub.f32 1.5, %v1004
        %v1006 = vmul.f32 %v1001, %v1005
        %vm1007 = vweird.f32 %v999
        %vm1008 = vweird.f32 %v1001
        %vm1009 = vmor %vm1007, %vm1008
        %v1010 = vsel %vm1009, %v1001, %v1006
        %v1011 = vrsqrt.pop %v1000
        %v1012 = vmul.f32 %v1011, %v1000
        %v1013 = vmul.f32 %v1012, %v1011
        %v1014 = vmul.f32 0.5, %v1013
        %v1015 = vsub.f32 1.5, %v1014
        %v1016 = vmul.f32 %v1011, %v1015
        %vm1017 = vweird.f32 %v1000
        %vm1018 = vweird.f32 %v1011
        %vm1019 = vmor %vm1017, %vm1018
        %v1020 = vsel %vm1019, %v1011, %v1016
        %v1021 = vmul.f32 %v987, %v1010
        %v1022 = vmul.f32 %v988, %v1020
        %v1024 = vperm.slane %v971, 0
        %1025 = vrot.lane.b32.xlu0 %v1024, 96
        %v1026 = vpop.permute.xlu0 %1025
        %v1028 = vmul.f32 %v1021, %v1026
        %v1029 = vmul.f32 %v1022, %v1026
        %1030 = vrot.lane.b32.xlu0 %v1024, 64
        %v1031 = vpop.permute.xlu0 %1030
        %v1033 = vadd.f32 %v1028, %v1031
        %v1034 = vadd.f32 %v1029, %v1031
        %v1035 = vld [vmem:[#allocation2 + $0x8] sm:$0xff]
        %v1036 = vld [vmem:[#allocation2 + $0x20] sm:$0xff]
        %v1037 = vld [vmem:[#allocation2 + $0x38] sm:$0xff]
        %v1038 = vld [vmem:[#allocation2 + $0x50] sm:$0xff]
        %v1039 = vld [vmem:[%s5 + $0x1] sm:$0x1]
        %v1041 = vperm.slane %v1039, 0
        %1042 = vrot.lane.b32.xlu0 %v1041, 96
        %v1043 = vpop.permute.xlu0 %1042
        %v1046 = vsel %vm324, %v1033, 0
        %v1049 = vsel %vm324, %v1034, 0
        %1051 = vmatpush.msra.mxu0 0.0
        %1052 = vmatpush.msra.mxu0 0.0
        %1053 = vmatpush.msra.mxu0 0.0
        %1054 = vmatpush.msra.mxu0 0.0
        %1055 = vmatpush.msra.mxu0 0.0
        %1056 = vmatpush.msra.mxu0 0.0
        %1057 = vmatpush.msra.mxu0 0.0
        %1058 = vmatpush.msra.mxu0 0.0
        %1059 = vmatpush.msra.mxu0 0.0
        %1060 = vmatpush.msra.mxu0 0.0
        %1061 = vmatpush.msra.mxu0 0.0
        %1062 = vmatpush.msra.mxu0 0.0
        %1063 = vmatpush.msra.mxu0 %v1038
        %1064 = vmatpush.msra.mxu0 %v1037
        %1065 = vmatpush.msra.mxu0 %v1036
        %1066 = vmatpush.msra.mxu0 %v1035
        %1067 = vmatmul.f32.gmra.mxu0 %v1046
        %v1068 = vpop.f32.mrf.mxu0
        %v1069 = vadd.f32 %v1043, %v1068
        %1070 = vmatmul.f32.gmra.mxu0 %v1049
        %v1071 = vpop.f32.mrf.mxu0
        %v1072 = vadd.f32 %v1043, %v1071
        %1073 = vdwg.mxu0
        %1078 = vrot.lane.b32.xlu0 %v1035, 96
        %v1079 = vpop.permute.xlu0 %1078
        %1080 = vrot.lane.b32.xlu0 %v1036, 96
        %v1081 = vpop.permute.xlu0 %1080
        %1082 = vrot.lane.b32.xlu0 %v1037, 96
        %v1083 = vpop.permute.xlu0 %1082
        %1084 = vrot.lane.b32.xlu0 %v1038, 96
        %v1085 = vpop.permute.xlu0 %1084
        %1090 = vrot.lane.b32.xlu0 %v1041, 64
        %v1091 = vpop.permute.xlu0 %1090
        %1093 = vmatpush.msra.mxu0 0.0
        %1094 = vmatpush.msra.mxu0 0.0
        %1095 = vmatpush.msra.mxu0 0.0
        %1096 = vmatpush.msra.mxu0 0.0
        %1097 = vmatpush.msra.mxu0 0.0
        %1098 = vmatpush.msra.mxu0 0.0
        %1099 = vmatpush.msra.mxu0 0.0
        %1100 = vmatpush.msra.mxu0 0.0
        %1101 = vmatpush.msra.mxu0 0.0
        %1102 = vmatpush.msra.mxu0 0.0
        %1103 = vmatpush.msra.mxu0 0.0
        %1104 = vmatpush.msra.mxu0 0.0
        %1105 = vmatpush.msra.mxu0 %v1085
        %1106 = vmatpush.msra.mxu0 %v1083
        %1107 = vmatpush.msra.mxu0 %v1081
        %1108 = vmatpush.msra.mxu0 %v1079
        %1109 = vmatmul.f32.gmra.mxu0 %v326
        %v1110 = vpop.f32.mrf.mxu0
        %v1111 = vadd.f32 %v1091, %v1110
        %1112 = vmatmul.f32.gmra.mxu0 %v329
        %v1113 = vpop.f32.mrf.mxu0
        %v1114 = vadd.f32 %v1091, %v1113
        %1115 = vdwg.mxu0
        %1116 = vrot.lane.b32.xlu0 %v1035, 64
        %v1117 = vpop.permute.xlu0 %1116
        %1118 = vrot.lane.b32.xlu0 %v1036, 64
        %v1119 = vpop.permute.xlu0 %1118
        %1120 = vrot.lane.b32.xlu0 %v1037, 64
        %v1121 = vpop.permute.xlu0 %1120
        %1122 = vrot.lane.b32.xlu0 %v1038, 64
        %v1123 = vpop.permute.xlu0 %1122
        %1128 = vrot.lane.b32.xlu0 %v1041, 32
        %v1129 = vpop.permute.xlu0 %1128
        %1131 = vmatpush.msra.mxu0 0.0
        %1132 = vmatpush.msra.mxu0 0.0
        %1133 = vmatpush.msra.mxu0 0.0
        %1134 = vmatpush.msra.mxu0 0.0
        %1135 = vmatpush.msra.mxu0 0.0
        %1136 = vmatpush.msra.mxu0 0.0
        %1137 = vmatpush.msra.mxu0 0.0
        %1138 = vmatpush.msra.mxu0 0.0
        %1139 = vmatpush.msra.mxu0 0.0
        %1140 = vmatpush.msra.mxu0 0.0
        %1141 = vmatpush.msra.mxu0 0.0
        %1142 = vmatpush.msra.mxu0 0.0
        %1143 = vmatpush.msra.mxu0 %v1123
        %1144 = vmatpush.msra.mxu0 %v1121
        %1145 = vmatpush.msra.mxu0 %v1119
        %1146 = vmatpush.msra.mxu0 %v1117
        %1147 = vmatmul.f32.gmra.mxu0 %v326
        %v1148 = vpop.f32.mrf.mxu0
        %v1149 = vadd.f32 %v1129, %v1148
        %1150 = vmatmul.f32.gmra.mxu0 %v329
        %v1151 = vpop.f32.mrf.mxu0
        %v1152 = vadd.f32 %v1129, %v1151
        %1153 = vdwg.mxu0
        %v1154 = vmul.f32 %v1069, 0.35355338
        %v1155 = vmul.f32 %v1072, 0.35355338
        %1158 = vrot.lane.b32.xlu0 %v1154, 120
        %v1159 = vpop.permute.xlu0 %1158
        %1160 = vrot.lane.b32.xlu0 %v1155, 120
        %v1161 = vpop.permute.xlu0 %1160
        %1162 = vrot.lane.b32.xlu0 %v1154, 112
        %v1163 = vpop.permute.xlu0 %1162
        %1164 = vrot.lane.b32.xlu0 %v1155, 112
        %v1165 = vpop.permute.xlu0 %1164
        %1166 = vrot.lane.b32.xlu0 %v1154, 104
        %v1167 = vpop.permute.xlu0 %1166
        %1168 = vrot.lane.b32.xlu0 %v1155, 104
        %v1169 = vpop.permute.xlu0 %1168
        %1172 = vrot.lane.b32.xlu0 %v1111, 120
        %v1173 = vpop.permute.xlu0 %1172
        %1174 = vrot.lane.b32.xlu0 %v1114, 120
        %v1175 = vpop.permute.xlu0 %1174
        %1176 = vrot.lane.b32.xlu0 %v1111, 112
        %v1177 = vpop.permute.xlu0 %1176
        %1178 = vrot.lane.b32.xlu0 %v1114, 112
        %v1179 = vpop.permute.xlu0 %1178
        %1180 = vrot.lane.b32.xlu0 %v1111, 104
        %v1181 = vpop.permute.xlu0 %1180
        %1182 = vrot.lane.b32.xlu0 %v1114, 104
        %v1183 = vpop.permute.xlu0 %1182
        %1186 = vrot.lane.b32.xlu0 %v1149, 120
        %v1187 = vpop.permute.xlu0 %1186
        %1188 = vrot.lane.b32.xlu0 %v1152, 120
        %v1189 = vpop.permute.xlu0 %1188
        %1192 = vrot.lane.b32.xlu0 %v1149, 112
        %v1193 = vpop.permute.xlu0 %1192
        %1194 = vrot.lane.b32.xlu0 %v1152, 112
        %v1195 = vpop.permute.xlu0 %1194
        %1198 = vrot.lane.b32.xlu0 %v1149, 104
        %v1199 = vpop.permute.xlu0 %1198
        %1200 = vrot.lane.b32.xlu0 %v1152, 104
        %v1201 = vpop.permute.xlu0 %1200
        %v1204 = vsel %vm387, %v1154, 0
        %v1206 = vsel %vm387, %v1111, 0
        %1208 = vmatpush.xpose.msra.mxu0 0.0
        %1209 = vmatpush.xpose.msra.mxu0 0.0
        %1210 = vmatpush.xpose.msra.mxu0 0.0
        %1211 = vmatpush.xpose.msra.mxu0 0.0
        %1212 = vmatpush.xpose.msra.mxu0 0.0
        %1213 = vmatpush.xpose.msra.mxu0 0.0
        %1214 = vmatpush.xpose.msra.mxu0 0.0
        %1215 = vmatpush.xpose.msra.mxu0 0.0
        %1216 = vmatpush.xpose.msra.mxu0 0.0
        %1217 = vmatpush.xpose.msra.mxu0 0.0
        %1218 = vmatpush.xpose.msra.mxu0 0.0
        %1219 = vmatpush.xpose.msra.mxu0 0.0
        %1220 = vmatpush.xpose.msra.mxu0 0.0
        %1221 = vmatpush.xpose.msra.mxu0 0.0
        %1222 = vmatpush.xpose.msra.mxu0 0.0
        %1223 = vmatpush.xpose.msra.mxu0 %v1206
        %1224 = vmatmul.f32.gmra.mxu0 %v1204
        %v1225 = vpop.f32.mrf.mxu0
        %v1226 = vadd.f32 0.0, %v1225
        %1227 = vdwg.mxu0
        %v1228 = vsel %vm387, %v1155, 0
        %v1230 = vsel %vm387, %v1114, 0
        %1232 = vmatpush.xpose.msra.mxu0 0.0
        %1233 = vmatpush.xpose.msra.mxu0 0.0
        %1234 = vmatpush.xpose.msra.mxu0 0.0
        %1235 = vmatpush.xpose.msra.mxu0 0.0
        %1236 = vmatpush.xpose.msra.mxu0 0.0
        %1237 = vmatpush.xpose.msra.mxu0 0.0
        %1238 = vmatpush.xpose.msra.mxu0 0.0
        %1239 = vmatpush.xpose.msra.mxu0 0.0
        %1240 = vmatpush.xpose.msra.mxu0 0.0
        %1241 = vmatpush.xpose.msra.mxu0 0.0
        %1242 = vmatpush.xpose.msra.mxu0 0.0
        %1243 = vmatpush.xpose.msra.mxu0 0.0
        %1244 = vmatpush.xpose.msra.mxu0 0.0
        %1245 = vmatpush.xpose.msra.mxu0 0.0
        %1246 = vmatpush.xpose.msra.mxu0 0.0
        %1247 = vmatpush.xpose.msra.mxu0 %v1230
        %1248 = vmatmul.f32.gmra.mxu0 %v1228
        %v1249 = vpop.f32.mrf.mxu0
        %v1250 = vadd.f32 0.0, %v1249
        %1251 = vdwg.mxu0
        %v1252 = vsel %vm387, %v1159, 0
        %v1254 = vsel %vm387, %v1173, 0
        %1256 = vmatpush.xpose.msra.mxu0 0.0
        %1257 = vmatpush.xpose.msra.mxu0 0.0
        %1258 = vmatpush.xpose.msra.mxu0 0.0
        %1259 = vmatpush.xpose.msra.mxu0 0.0
        %1260 = vmatpush.xpose.msra.mxu0 0.0
        %1261 = vmatpush.xpose.msra.mxu0 0.0
        %1262 = vmatpush.xpose.msra.mxu0 0.0
        %1263 = vmatpush.xpose.msra.mxu0 0.0
        %1264 = vmatpush.xpose.msra.mxu0 0.0
        %1265 = vmatpush.xpose.msra.mxu0 0.0
        %1266 = vmatpush.xpose.msra.mxu0 0.0
        %1267 = vmatpush.xpose.msra.mxu0 0.0
        %1268 = vmatpush.xpose.msra.mxu0 0.0
        %1269 = vmatpush.xpose.msra.mxu0 0.0
        %1270 = vmatpush.xpose.msra.mxu0 0.0
        %1271 = vmatpush.xpose.msra.mxu0 %v1254
        %1272 = vmatmul.f32.gmra.mxu0 %v1252
        %v1273 = vpop.f32.mrf.mxu0
        %v1274 = vadd.f32 0.0, %v1273
        %1275 = vdwg.mxu0
        %v1276 = vsel %vm387, %v1161, 0
        %v1278 = vsel %vm387, %v1175, 0
        %1280 = vmatpush.xpose.msra.mxu0 0.0
        %1281 = vmatpush.xpose.msra.mxu0 0.0
        %1282 = vmatpush.xpose.msra.mxu0 0.0
        %1283 = vmatpush.xpose.msra.mxu0 0.0
        %1284 = vmatpush.xpose.msra.mxu0 0.0
        %1285 = vmatpush.xpose.msra.mxu0 0.0
        %1286 = vmatpush.xpose.msra.mxu0 0.0
        %1287 = vmatpush.xpose.msra.mxu0 0.0
        %1288 = vmatpush.xpose.msra.mxu0 0.0
        %1289 = vmatpush.xpose.msra.mxu0 0.0
        %1290 = vmatpush.xpose.msra.mxu0 0.0
        %1291 = vmatpush.xpose.msra.mxu0 0.0
        %1292 = vmatpush.xpose.msra.mxu0 0.0
        %1293 = vmatpush.xpose.msra.mxu0 0.0
        %1294 = vmatpush.xpose.msra.mxu0 0.0
        %1295 = vmatpush.xpose.msra.mxu0 %v1278
        %1296 = vmatmul.f32.gmra.mxu0 %v1276
        %v1297 = vpop.f32.mrf.mxu0
        %v1298 = vadd.f32 0.0, %v1297
        %1299 = vdwg.mxu0
        %v1300 = vsel %vm387, %v1163, 0
        %v1302 = vsel %vm387, %v1177, 0
        %1304 = vmatpush.xpose.msra.mxu0 0.0
        %1305 = vmatpush.xpose.msra.mxu0 0.0
        %1306 = vmatpush.xpose.msra.mxu0 0.0
        %1307 = vmatpush.xpose.msra.mxu0 0.0
        %1308 = vmatpush.xpose.msra.mxu0 0.0
        %1309 = vmatpush.xpose.msra.mxu0 0.0
        %1310 = vmatpush.xpose.msra.mxu0 0.0
        %1311 = vmatpush.xpose.msra.mxu0 0.0
        %1312 = vmatpush.xpose.msra.mxu0 0.0
        %1313 = vmatpush.xpose.msra.mxu0 0.0
        %1314 = vmatpush.xpose.msra.mxu0 0.0
        %1315 = vmatpush.xpose.msra.mxu0 0.0
        %1316 = vmatpush.xpose.msra.mxu0 0.0
        %1317 = vmatpush.xpose.msra.mxu0 0.0
        %1318 = vmatpush.xpose.msra.mxu0 0.0
        %1319 = vmatpush.xpose.msra.mxu0 %v1302
        %1320 = vmatmul.f32.gmra.mxu0 %v1300
        %v1321 = vpop.f32.mrf.mxu0
        %v1322 = vadd.f32 0.0, %v1321
        %1323 = vdwg.mxu0
        %v1324 = vsel %vm387, %v1165, 0
        %v1326 = vsel %vm387, %v1179, 0
        %1328 = vmatpush.xpose.msra.mxu0 0.0
        %1329 = vmatpush.xpose.msra.mxu0 0.0
        %1330 = vmatpush.xpose.msra.mxu0 0.0
        %1331 = vmatpush.xpose.msra.mxu0 0.0
        %1332 = vmatpush.xpose.msra.mxu0 0.0
        %1333 = vmatpush.xpose.msra.mxu0 0.0
        %1334 = vmatpush.xpose.msra.mxu0 0.0
        %1335 = vmatpush.xpose.msra.mxu0 0.0
        %1336 = vmatpush.xpose.msra.mxu0 0.0
        %1337 = vmatpush.xpose.msra.mxu0 0.0
        %1338 = vmatpush.xpose.msra.mxu0 0.0
        %1339 = vmatpush.xpose.msra.mxu0 0.0
        %1340 = vmatpush.xpose.msra.mxu0 0.0
        %1341 = vmatpush.xpose.msra.mxu0 0.0
        %1342 = vmatpush.xpose.msra.mxu0 0.0
        %1343 = vmatpush.xpose.msra.mxu0 %v1326
        %1344 = vmatmul.f32.gmra.mxu0 %v1324
        %v1345 = vpop.f32.mrf.mxu0
        %v1346 = vadd.f32 0.0, %v1345
        %1347 = vdwg.mxu0
        %v1348 = vsel %vm387, %v1167, 0
        %v1350 = vsel %vm387, %v1181, 0
        %1352 = vmatpush.xpose.msra.mxu0 0.0
        %1353 = vmatpush.xpose.msra.mxu0 0.0
        %1354 = vmatpush.xpose.msra.mxu0 0.0
        %1355 = vmatpush.xpose.msra.mxu0 0.0
        %1356 = vmatpush.xpose.msra.mxu0 0.0
        %1357 = vmatpush.xpose.msra.mxu0 0.0
        %1358 = vmatpush.xpose.msra.mxu0 0.0
        %1359 = vmatpush.xpose.msra.mxu0 0.0
        %1360 = vmatpush.xpose.msra.mxu0 0.0
        %1361 = vmatpush.xpose.msra.mxu0 0.0
        %1362 = vmatpush.xpose.msra.mxu0 0.0
        %1363 = vmatpush.xpose.msra.mxu0 0.0
        %1364 = vmatpush.xpose.msra.mxu0 0.0
        %1365 = vmatpush.xpose.msra.mxu0 0.0
        %1366 = vmatpush.xpose.msra.mxu0 0.0
        %1367 = vmatpush.xpose.msra.mxu0 %v1350
        %1368 = vmatmul.f32.gmra.mxu0 %v1348
        %v1369 = vpop.f32.mrf.mxu0
        %v1370 = vadd.f32 0.0, %v1369
        %1371 = vdwg.mxu0
        %v1372 = vsel %vm387, %v1169, 0
        %v1374 = vsel %vm387, %v1183, 0
        %1376 = vmatpush.xpose.msra.mxu0 0.0
        %1377 = vmatpush.xpose.msra.mxu0 0.0
        %1378 = vmatpush.xpose.msra.mxu0 0.0
        %1379 = vmatpush.xpose.msra.mxu0 0.0
        %1380 = vmatpush.xpose.msra.mxu0 0.0
        %1381 = vmatpush.xpose.msra.mxu0 0.0
        %1382 = vmatpush.xpose.msra.mxu0 0.0
        %1383 = vmatpush.xpose.msra.mxu0 0.0
        %1384 = vmatpush.xpose.msra.mxu0 0.0
        %1385 = vmatpush.xpose.msra.mxu0 0.0
        %1386 = vmatpush.xpose.msra.mxu0 0.0
        %1387 = vmatpush.xpose.msra.mxu0 0.0
        %1388 = vmatpush.xpose.msra.mxu0 0.0
        %1389 = vmatpush.xpose.msra.mxu0 0.0
        %1390 = vmatpush.xpose.msra.mxu0 0.0
        %1391 = vmatpush.xpose.msra.mxu0 %v1374
        %1392 = vmatmul.f32.gmra.mxu0 %v1372
        %v1393 = vpop.f32.mrf.mxu0
        %v1394 = vadd.f32 0.0, %v1393
        %1395 = vdwg.mxu0
        %v1396 = vsel %vm387, %v1226, -inf
        %1397 = vmax.xlane.f32.xlu0 %v1396
        %v1398 = vpop.xlane.xlu0 %1397
        %v1399 = vsel %vm387, %v1250, -inf
        %1400 = vmax.xlane.f32.xlu0 %v1399
        %v1401 = vpop.xlane.xlu0 %1400
        %v1402 = vsel %vm387, %v1274, -inf
        %1403 = vmax.xlane.f32.xlu0 %v1402
        %v1404 = vpop.xlane.xlu0 %1403
        %v1405 = vsel %vm387, %v1298, -inf
        %1406 = vmax.xlane.f32.xlu0 %v1405
        %v1407 = vpop.xlane.xlu0 %1406
        %v1408 = vsel %vm387, %v1322, -inf
        %1409 = vmax.xlane.f32.xlu0 %v1408
        %v1410 = vpop.xlane.xlu0 %1409
        %v1411 = vsel %vm387, %v1346, -inf
        %1412 = vmax.xlane.f32.xlu0 %v1411
        %v1413 = vpop.xlane.xlu0 %1412
        %v1414 = vsel %vm387, %v1370, -inf
        %1415 = vmax.xlane.f32.xlu0 %v1414
        %v1416 = vpop.xlane.xlu0 %1415
        %v1417 = vsel %vm387, %v1394, -inf
        %1418 = vmax.xlane.f32.xlu0 %v1417
        %v1419 = vpop.xlane.xlu0 %1418
        %v1420 = vsub.f32 %v1226, %v1398
        %v1421 = vsub.f32 %v1250, %v1401
        %v1422 = vsub.f32 %v1274, %v1404
        %v1423 = vsub.f32 %v1298, %v1407
        %v1424 = vsub.f32 %v1322, %v1410
        %v1425 = vsub.f32 %v1346, %v1413
        %v1426 = vsub.f32 %v1370, %v1416
        %v1427 = vsub.f32 %v1394, %v1419
        %v1428 = vmul.f32 %v1420, 1.442695
        %v1429 = vpow.pop %v1428
        %v1430 = vmul.f32 %v1421, 1.442695
        %v1431 = vpow.pop %v1430
        %v1432 = vmul.f32 %v1422, 1.442695
        %v1433 = vpow.pop %v1432
        %v1434 = vmul.f32 %v1423, 1.442695
        %v1435 = vpow.pop %v1434
        %v1436 = vmul.f32 %v1424, 1.442695
        %v1437 = vpow.pop %v1436
        %v1438 = vmul.f32 %v1425, 1.442695
        %v1439 = vpow.pop %v1438
        %v1440 = vmul.f32 %v1426, 1.442695
        %v1441 = vpow.pop %v1440
        %v1442 = vmul.f32 %v1427, 1.442695
        %v1443 = vpow.pop %v1442
        %v1444 = vsel %vm387, %v1429, 0.0
        %1445 = vadd.xlane.f32.xlu0 %v1444
        %v1446 = vpop.xlane.xlu0 %1445
        %v1447 = vsel %vm387, %v1431, 0.0
        %1448 = vadd.xlane.f32.xlu0 %v1447
        %v1449 = vpop.xlane.xlu0 %1448
        %v1450 = vsel %vm387, %v1433, 0.0
        %1451 = vadd.xlane.f32.xlu0 %v1450
        %v1452 = vpop.xlane.xlu0 %1451
        %v1453 = vsel %vm387, %v1435, 0.0
        %1454 = vadd.xlane.f32.xlu0 %v1453
        %v1455 = vpop.xlane.xlu0 %1454
        %v1456 = vsel %vm387, %v1437, 0.0
        %1457 = vadd.xlane.f32.xlu0 %v1456
        %v1458 = vpop.xlane.xlu0 %1457
        %v1459 = vsel %vm387, %v1439, 0.0
        %1460 = vadd.xlane.f32.xlu0 %v1459
        %v1461 = vpop.xlane.xlu0 %1460
        %v1462 = vsel %vm387, %v1441, 0.0
        %1463 = vadd.xlane.f32.xlu0 %v1462
        %v1464 = vpop.xlane.xlu0 %1463
        %v1465 = vsel %vm387, %v1443, 0.0
        %1466 = vadd.xlane.f32.xlu0 %v1465
        %v1467 = vpop.xlane.xlu0 %1466
        %v1468 = vrcp.pop %v1446
        %v1469 = vrcp.pop %v1449
        %v1470 = vrcp.pop %v1452
        %v1471 = vrcp.pop %v1455
        %v1472 = vrcp.pop %v1458
        %v1473 = vrcp.pop %v1461
        %v1474 = vrcp.pop %v1464
        %v1475 = vrcp.pop %v1467
        %v1476 = vmul.f32 %v1429, %v1468
        %v1477 = vmul.f32 %v1431, %v1469
        %v1478 = vmul.f32 %v1433, %v1470
        %v1479 = vmul.f32 %v1435, %v1471
        %v1480 = vmul.f32 %v1437, %v1472
        %v1481 = vmul.f32 %v1439, %v1473
        %v1482 = vmul.f32 %v1441, %v1474
        %v1483 = vmul.f32 %v1443, %v1475
        %v1485 = vsel %vm387, %v1476, 0
        %1487 = vmatpush.msra.mxu0 0.0
        %1488 = vmatpush.msra.mxu0 0.0
        %1489 = vmatpush.msra.mxu0 0.0
        %1490 = vmatpush.msra.mxu0 0.0
        %1491 = vmatpush.msra.mxu0 0.0
        %1492 = vmatpush.msra.mxu0 0.0
        %1493 = vmatpush.msra.mxu0 0.0
        %1494 = vmatpush.msra.mxu0 0.0
        %1495 = vmatpush.msra.mxu0 0.0
        %1496 = vmatpush.msra.mxu0 0.0
        %1497 = vmatpush.msra.mxu0 0.0
        %1498 = vmatpush.msra.mxu0 0.0
        %1499 = vmatpush.msra.mxu0 0.0
        %1500 = vmatpush.msra.mxu0 0.0
        %1501 = vmatpush.msra.mxu0 0.0
        %1502 = vmatpush.msra.mxu0 %v1149
        %1503 = vmatmul.f32.gmra.mxu0 %v1485
        %v1504 = vpop.f32.mrf.mxu0
        %v1505 = vadd.f32 0.0, %v1504
        %1506 = vdwg.mxu0
        %v1508 = vsel %vm387, %v1477, 0
        %1510 = vmatpush.msra.mxu0 0.0
        %1511 = vmatpush.msra.mxu0 0.0
        %1512 = vmatpush.msra.mxu0 0.0
        %1513 = vmatpush.msra.mxu0 0.0
        %1514 = vmatpush.msra.mxu0 0.0
        %1515 = vmatpush.msra.mxu0 0.0
        %1516 = vmatpush.msra.mxu0 0.0
        %1517 = vmatpush.msra.mxu0 0.0
        %1518 = vmatpush.msra.mxu0 0.0
        %1519 = vmatpush.msra.mxu0 0.0
        %1520 = vmatpush.msra.mxu0 0.0
        %1521 = vmatpush.msra.mxu0 0.0
        %1522 = vmatpush.msra.mxu0 0.0
        %1523 = vmatpush.msra.mxu0 0.0
        %1524 = vmatpush.msra.mxu0 0.0
        %1525 = vmatpush.msra.mxu0 %v1152
        %1526 = vmatmul.f32.gmra.mxu0 %v1508
        %v1527 = vpop.f32.mrf.mxu0
        %v1528 = vadd.f32 0.0, %v1527
        %1529 = vdwg.mxu0
        %v1531 = vsel %vm387, %v1478, 0
        %1533 = vmatpush.msra.mxu0 0.0
        %1534 = vmatpush.msra.mxu0 0.0
        %1535 = vmatpush.msra.mxu0 0.0
        %1536 = vmatpush.msra.mxu0 0.0
        %1537 = vmatpush.msra.mxu0 0.0
        %1538 = vmatpush.msra.mxu0 0.0
        %1539 = vmatpush.msra.mxu0 0.0
        %1540 = vmatpush.msra.mxu0 0.0
        %1541 = vmatpush.msra.mxu0 0.0
        %1542 = vmatpush.msra.mxu0 0.0
        %1543 = vmatpush.msra.mxu0 0.0
        %1544 = vmatpush.msra.mxu0 0.0
        %1545 = vmatpush.msra.mxu0 0.0
        %1546 = vmatpush.msra.mxu0 0.0
        %1547 = vmatpush.msra.mxu0 0.0
        %1548 = vmatpush.msra.mxu0 %v1187
        %1549 = vmatmul.f32.gmra.mxu0 %v1531
        %v1550 = vpop.f32.mrf.mxu0
        %v1551 = vadd.f32 0.0, %v1550
        %1552 = vdwg.mxu0
        %v1554 = vsel %vm387, %v1479, 0
        %1556 = vmatpush.msra.mxu0 0.0
        %1557 = vmatpush.msra.mxu0 0.0
        %1558 = vmatpush.msra.mxu0 0.0
        %1559 = vmatpush.msra.mxu0 0.0
        %1560 = vmatpush.msra.mxu0 0.0
        %1561 = vmatpush.msra.mxu0 0.0
        %1562 = vmatpush.msra.mxu0 0.0
        %1563 = vmatpush.msra.mxu0 0.0
        %1564 = vmatpush.msra.mxu0 0.0
        %1565 = vmatpush.msra.mxu0 0.0
        %1566 = vmatpush.msra.mxu0 0.0
        %1567 = vmatpush.msra.mxu0 0.0
        %1568 = vmatpush.msra.mxu0 0.0
        %1569 = vmatpush.msra.mxu0 0.0
        %1570 = vmatpush.msra.mxu0 0.0
        %1571 = vmatpush.msra.mxu0 %v1189
        %1572 = vmatmul.f32.gmra.mxu0 %v1554
        %v1573 = vpop.f32.mrf.mxu0
        %v1574 = vadd.f32 0.0, %v1573
        %1575 = vdwg.mxu0
        %v1577 = vsel %vm387, %v1480, 0
        %1579 = vmatpush.msra.mxu0 0.0
        %1580 = vmatpush.msra.mxu0 0.0
        %1581 = vmatpush.msra.mxu0 0.0
        %1582 = vmatpush.msra.mxu0 0.0
        %1583 = vmatpush.msra.mxu0 0.0
        %1584 = vmatpush.msra.mxu0 0.0
        %1585 = vmatpush.msra.mxu0 0.0
        %1586 = vmatpush.msra.mxu0 0.0
        %1587 = vmatpush.msra.mxu0 0.0
        %1588 = vmatpush.msra.mxu0 0.0
        %1589 = vmatpush.msra.mxu0 0.0
        %1590 = vmatpush.msra.mxu0 0.0
        %1591 = vmatpush.msra.mxu0 0.0
        %1592 = vmatpush.msra.mxu0 0.0
        %1593 = vmatpush.msra.mxu0 0.0
        %1594 = vmatpush.msra.mxu0 %v1193
        %1595 = vmatmul.f32.gmra.mxu0 %v1577
        %v1596 = vpop.f32.mrf.mxu0
        %v1597 = vadd.f32 0.0, %v1596
        %1598 = vdwg.mxu0
        %v1600 = vsel %vm387, %v1481, 0
        %1602 = vmatpush.msra.mxu0 0.0
        %1603 = vmatpush.msra.mxu0 0.0
        %1604 = vmatpush.msra.mxu0 0.0
        %1605 = vmatpush.msra.mxu0 0.0
        %1606 = vmatpush.msra.mxu0 0.0
        %1607 = vmatpush.msra.mxu0 0.0
        %1608 = vmatpush.msra.mxu0 0.0
        %1609 = vmatpush.msra.mxu0 0.0
        %1610 = vmatpush.msra.mxu0 0.0
        %1611 = vmatpush.msra.mxu0 0.0
        %1612 = vmatpush.msra.mxu0 0.0
        %1613 = vmatpush.msra.mxu0 0.0
        %1614 = vmatpush.msra.mxu0 0.0
        %1615 = vmatpush.msra.mxu0 0.0
        %1616 = vmatpush.msra.mxu0 0.0
        %1617 = vmatpush.msra.mxu0 %v1195
        %1618 = vmatmul.f32.gmra.mxu0 %v1600
        %v1619 = vpop.f32.mrf.mxu0
        %v1620 = vadd.f32 0.0, %v1619
        %1621 = vdwg.mxu0
        %v1623 = vsel %vm387, %v1482, 0
        %1625 = vmatpush.msra.mxu0 0.0
        %1626 = vmatpush.msra.mxu0 0.0
        %1627 = vmatpush.msra.mxu0 0.0
        %1628 = vmatpush.msra.mxu0 0.0
        %1629 = vmatpush.msra.mxu0 0.0
        %1630 = vmatpush.msra.mxu0 0.0
        %1631 = vmatpush.msra.mxu0 0.0
        %1632 = vmatpush.msra.mxu0 0.0
        %1633 = vmatpush.msra.mxu0 0.0
        %1634 = vmatpush.msra.mxu0 0.0
        %1635 = vmatpush.msra.mxu0 0.0
        %1636 = vmatpush.msra.mxu0 0.0
        %1637 = vmatpush.msra.mxu0 0.0
        %1638 = vmatpush.msra.mxu0 0.0
        %1639 = vmatpush.msra.mxu0 0.0
        %1640 = vmatpush.msra.mxu0 %v1199
        %1641 = vmatmul.f32.gmra.mxu0 %v1623
        %v1642 = vpop.f32.mrf.mxu0
        %v1643 = vadd.f32 0.0, %v1642
        %1644 = vdwg.mxu0
        %v1646 = vsel %vm387, %v1483, 0
        %1648 = vmatpush.msra.mxu0 0.0
        %1649 = vmatpush.msra.mxu0 0.0
        %1650 = vmatpush.msra.mxu0 0.0
        %1651 = vmatpush.msra.mxu0 0.0
        %1652 = vmatpush.msra.mxu0 0.0
        %1653 = vmatpush.msra.mxu0 0.0
        %1654 = vmatpush.msra.mxu0 0.0
        %1655 = vmatpush.msra.mxu0 0.0
        %1656 = vmatpush.msra.mxu0 0.0
        %1657 = vmatpush.msra.mxu0 0.0
        %1658 = vmatpush.msra.mxu0 0.0
        %1659 = vmatpush.msra.mxu0 0.0
        %1660 = vmatpush.msra.mxu0 0.0
        %1661 = vmatpush.msra.mxu0 0.0
        %1662 = vmatpush.msra.mxu0 0.0
        %1663 = vmatpush.msra.mxu0 %v1201
        %1664 = vmatmul.f32.gmra.mxu0 %v1646
        %v1665 = vpop.f32.mrf.mxu0
        %v1666 = vadd.f32 0.0, %v1665
        %1667 = vdwg.mxu0
        %1670 = vrot.lane.b32.xlu0 %v1551, 8
        %v1671 = vpop.permute.xlu0 %1670
        %1672 = vrot.lane.b32.xlu0 %v1574, 8
        %v1673 = vpop.permute.xlu0 %1672
        %1678 = vrot.lane.b32.xlu0 %v1597, 16
        %v1679 = vpop.permute.xlu0 %1678
        %1680 = vrot.lane.b32.xlu0 %v1620, 16
        %v1681 = vpop.permute.xlu0 %1680
        %1686 = vrot.lane.b32.xlu0 %v1643, 24
        %v1687 = vpop.permute.xlu0 %1686
        %1688 = vrot.lane.b32.xlu0 %v1666, 24
        %v1689 = vpop.permute.xlu0 %1688
        %v1692 = vsel %vm387, %v1505, %v1671
        %v1693 = vsel %vm387, %v1528, %v1673
        %v1694 = vsel %vm284, %v1692, %v1679
        %v1695 = vsel %vm284, %v1693, %v1681
        %v1696 = vsel %vm918, %v1694, %v1687
        %v1697 = vsel %vm918, %v1695, %v1689
        %1699 = vrot.lane.b32.xlu0 %v1035, 32
        %v1700 = vpop.permute.xlu0 %1699
        %1701 = vrot.lane.b32.xlu0 %v1036, 32
        %v1702 = vpop.permute.xlu0 %1701
        %1703 = vrot.lane.b32.xlu0 %v1037, 32
        %v1704 = vpop.permute.xlu0 %1703
        %1705 = vrot.lane.b32.xlu0 %v1038, 32
        %v1706 = vpop.permute.xlu0 %1705
        %v1712 = vsel %vm324, %v1696, 0
        %v1715 = vsel %vm324, %v1697, 0
        %1717 = vmatpush.msra.mxu0 0.0
        %1718 = vmatpush.msra.mxu0 0.0
        %1719 = vmatpush.msra.mxu0 0.0
        %1720 = vmatpush.msra.mxu0 0.0
        %1721 = vmatpush.msra.mxu0 0.0
        %1722 = vmatpush.msra.mxu0 0.0
        %1723 = vmatpush.msra.mxu0 0.0
        %1724 = vmatpush.msra.mxu0 0.0
        %1725 = vmatpush.msra.mxu0 0.0
        %1726 = vmatpush.msra.mxu0 0.0
        %1727 = vmatpush.msra.mxu0 0.0
        %1728 = vmatpush.msra.mxu0 0.0
        %1729 = vmatpush.msra.mxu0 %v1706
        %1730 = vmatpush.msra.mxu0 %v1704
        %1731 = vmatpush.msra.mxu0 %v1702
        %1732 = vmatpush.msra.mxu0 %v1700
        %1733 = vmatmul.f32.gmra.mxu0 %v1712
        %v1734 = vpop.f32.mrf.mxu0
        %v1735 = vadd.f32 %v1024, %v1734
        %1736 = vmatmul.f32.gmra.mxu0 %v1715
        %v1737 = vpop.f32.mrf.mxu0
        %v1738 = vadd.f32 %v1024, %v1737
        %1739 = vdwg.mxu0
        %v1740 = vadd.f32 %v1033, %v1735
        %v1741 = vadd.f32 %v1034, %v1738
        %v1742 = vld [vmem:[%s5 + $0x2] sm:$0x1]
        %v1743 = vld [vmem:[%s5 + $0x3] sm:$0x1]
        %v1744 = vsel %vm324, %v1740, 0.0
        %1745 = vadd.xlane.f32.xlu0 %v1744
        %v1746 = vpop.xlane.xlu0 %1745
        %v1747 = vsel %vm324, %v1741, 0.0
        %1748 = vadd.xlane.f32.xlu0 %v1747
        %v1749 = vpop.xlane.xlu0 %1748
        %v1750 = vmul.f32 %v1746, %v984
        %v1751 = vmul.f32 %v1749, %v984
        %v1752 = vsub.f32 %v1740, %v1750
        %v1753 = vsub.f32 %v1741, %v1751
        %v1754 = vmul.f32 %v1752, %v1752
        %v1755 = vmul.f32 %v1753, %v1753
        %v1756 = vsel %vm324, %v1754, 0.0
        %1757 = vadd.xlane.f32.xlu0 %v1756
        %v1758 = vpop.xlane.xlu0 %1757
        %v1759 = vsel %vm324, %v1755, 0.0
        %1760 = vadd.xlane.f32.xlu0 %v1759
        %v1761 = vpop.xlane.xlu0 %1760
        %v1762 = vmul.f32 %v1758, %v984
        %v1763 = vmul.f32 %v1761, %v984
        %v1764 = vadd.f32 %v1762, 1e-05
        %v1765 = vadd.f32 %v1763, 1e-05
        %v1766 = vrsqrt.pop %v1764
        %v1767 = vmul.f32 %v1766, %v1764
        %v1768 = vmul.f32 %v1767, %v1766
        %v1769 = vmul.f32 0.5, %v1768
        %v1770 = vsub.f32 1.5, %v1769
        %v1771 = vmul.f32 %v1766, %v1770
        %vm1772 = vweird.f32 %v1764
        %vm1773 = vweird.f32 %v1766
        %vm1774 = vmor %vm1772, %vm1773
        %v1775 = vsel %vm1774, %v1766, %v1771
        %v1776 = vrsqrt.pop %v1765
        %v1777 = vmul.f32 %v1776, %v1765
        %v1778 = vmul.f32 %v1777, %v1776
        %v1779 = vmul.f32 0.5, %v1778
        %v1780 = vsub.f32 1.5, %v1779
        %v1781 = vmul.f32 %v1776, %v1780
        %vm1782 = vweird.f32 %v1765
        %vm1783 = vweird.f32 %v1776
        %vm1784 = vmor %vm1782, %vm1783
        %v1785 = vsel %vm1784, %v1776, %v1781
        %v1786 = vmul.f32 %v1752, %v1775
        %v1787 = vmul.f32 %v1753, %v1785
        %v1789 = vperm.slane %v1742, 0
        %1790 = vrot.lane.b32.xlu0 %v1789, 32
        %v1791 = vpop.permute.xlu0 %1790
        %v1793 = vmul.f32 %v1786, %v1791
        %v1794 = vmul.f32 %v1787, %v1791
        %v1796 = vperm.slane %v1743, 0
        %v1798 = vadd.f32 %v1793, %v1796
        %v1799 = vadd.f32 %v1794, %v1796
        %v1800 = vld [vmem:[#allocation2 + $0x10] sm:$0xff]
        %v1801 = vld [vmem:[#allocation2 + $0x28] sm:$0xff]
        %v1802 = vld [vmem:[#allocation2 + $0x40] sm:$0xff]
        %v1803 = vld [vmem:[#allocation2 + $0x58] sm:$0xff]
        %1804 = vrot.lane.b32.xlu0 %v1796, 32
        %v1805 = vpop.permute.xlu0 %1804
        %v1808 = vsel %vm324, %v1798, 0
        %v1811 = vsel %vm324, %v1799, 0
        %1813 = vmatpush.msra.mxu0 0.0
        %1814 = vmatpush.msra.mxu0 0.0
        %1815 = vmatpush.msra.mxu0 0.0
        %1816 = vmatpush.msra.mxu0 0.0
        %1817 = vmatpush.msra.mxu0 0.0
        %1818 = vmatpush.msra.mxu0 0.0
        %1819 = vmatpush.msra.mxu0 0.0
        %1820 = vmatpush.msra.mxu0 0.0
        %1821 = vmatpush.msra.mxu0 0.0
        %1822 = vmatpush.msra.mxu0 0.0
        %1823 = vmatpush.msra.mxu0 0.0
        %1824 = vmatpush.msra.mxu0 0.0
        %1825 = vmatpush.msra.mxu0 %v1803
        %1826 = vmatpush.msra.mxu0 %v1802
        %1827 = vmatpush.msra.mxu0 %v1801
        %1828 = vmatpush.msra.mxu0 %v1800
        %1829 = vmatmul.f32.gmra.mxu0 %v1808
        %v1830 = vpop.f32.mrf.mxu0
        %v1831 = vadd.f32 %v1805, %v1830
        %1832 = vmatmul.f32.gmra.mxu0 %v1811
        %v1833 = vpop.f32.mrf.mxu0
        %v1834 = vadd.f32 %v1805, %v1833
        %1835 = vdwg.mxu0
        %v1836 = vmax.f32 %v1831, 0.0
        %v1837 = vmax.f32 %v1834, 0.0
        %v1838 = vld [vmem:[%s5 + $0x4] sm:$0x1]
        %v1840 = vperm.slane %v1838, 0
        %1846 = vrot.lane.b32.xlu0 %v1800, 96
        %v1847 = vpop.permute.xlu0 %1846
        %1848 = vrot.lane.b32.xlu0 %v1801, 96
        %v1849 = vpop.permute.xlu0 %1848
        %1850 = vrot.lane.b32.xlu0 %v1802, 96
        %v1851 = vpop.permute.xlu0 %1850
        %1852 = vrot.lane.b32.xlu0 %v1803, 96
        %v1853 = vpop.permute.xlu0 %1852
        %v1859 = vsel %vm324, %v1836, 0
        %v1862 = vsel %vm324, %v1837, 0
        %1864 = vmatpush.msra.mxu0 0.0
        %1865 = vmatpush.msra.mxu0 0.0
        %1866 = vmatpush.msra.mxu0 0.0
        %1867 = vmatpush.msra.mxu0 0.0
        %1868 = vmatpush.msra.mxu0 0.0
        %1869 = vmatpush.msra.mxu0 0.0
        %1870 = vmatpush.msra.mxu0 0.0
        %1871 = vmatpush.msra.mxu0 0.0
        %1872 = vmatpush.msra.mxu0 0.0
        %1873 = vmatpush.msra.mxu0 0.0
        %1874 = vmatpush.msra.mxu0 0.0
        %1875 = vmatpush.msra.mxu0 0.0
        %1876 = vmatpush.msra.mxu0 %v1853
        %1877 = vmatpush.msra.mxu0 %v1851
        %1878 = vmatpush.msra.mxu0 %v1849
        %1879 = vmatpush.msra.mxu0 %v1847
        %1880 = vmatmul.f32.gmra.mxu0 %v1859
        %v1881 = vpop.f32.mrf.mxu0
        %v1882 = vadd.f32 %v1840, %v1881
        %1883 = vmatmul.f32.gmra.mxu0 %v1862
        %v1884 = vpop.f32.mrf.mxu0
        %v1885 = vadd.f32 %v1840, %v1884
        %1886 = vdwg.mxu0
        %v1887 = vadd.f32 %v1798, %v1882
        %v1888 = vadd.f32 %v1799, %v1885
        %v1889 = vsel %vm324, %v1887, 0.0
        %1890 = vadd.xlane.f32.xlu0 %v1889
        %v1891 = vpop.xlane.xlu0 %1890
        %v1892 = vsel %vm324, %v1888, 0.0
        %1893 = vadd.xlane.f32.xlu0 %v1892
        %v1894 = vpop.xlane.xlu0 %1893
        %v1895 = vmul.f32 %v1891, %v984
        %v1896 = vmul.f32 %v1894, %v984
        %v1897 = vsub.f32 %v1887, %v1895
        %v1898 = vsub.f32 %v1888, %v1896
        %v1899 = vmul.f32 %v1897, %v1897
        %v1900 = vmul.f32 %v1898, %v1898
        %v1901 = vsel %vm324, %v1899, 0.0
        %1902 = vadd.xlane.f32.xlu0 %v1901
        %v1903 = vpop.xlane.xlu0 %1902
        %v1904 = vsel %vm324, %v1900, 0.0
        %1905 = vadd.xlane.f32.xlu0 %v1904
        %v1906 = vpop.xlane.xlu0 %1905
        %v1907 = vmul.f32 %v1903, %v984
        %v1908 = vmul.f32 %v1906, %v984
        %v1909 = vadd.f32 %v1907, 1e-05
        %v1910 = vadd.f32 %v1908, 1e-05
        %v1911 = vrsqrt.pop %v1909
        %v1912 = vmul.f32 %v1911, %v1909
        %v1913 = vmul.f32 %v1912, %v1911
        %v1914 = vmul.f32 0.5, %v1913
        %v1915 = vsub.f32 1.5, %v1914
        %v1916 = vmul.f32 %v1911, %v1915
        %vm1917 = vweird.f32 %v1909
        %vm1918 = vweird.f32 %v1911
        %vm1919 = vmor %vm1917, %vm1918
        %v1920 = vsel %vm1919, %v1911, %v1916
        %v1921 = vrsqrt.pop %v1910
        %v1922 = vmul.f32 %v1921, %v1910
        %v1923 = vmul.f32 %v1922, %v1921
        %v1924 = vmul.f32 0.5, %v1923
        %v1925 = vsub.f32 1.5, %v1924
        %v1926 = vmul.f32 %v1921, %v1925
        %vm1927 = vweird.f32 %v1910
        %vm1928 = vweird.f32 %v1921
        %vm1929 = vmor %vm1927, %vm1928
        %v1930 = vsel %vm1929, %v1921, %v1926
        %v1931 = vmul.f32 %v1897, %v1920
        %v1932 = vmul.f32 %v1898, %v1930
        %1933 = vrot.lane.b32.xlu0 %v1796, 96
        %v1934 = vpop.permute.xlu0 %1933
        %v1936 = vmul.f32 %v1931, %v1934
        %v1937 = vmul.f32 %v1932, %v1934
        %1938 = vrot.lane.b32.xlu0 %v1796, 64
        %v1939 = vpop.permute.xlu0 %1938
        %v1941 = vadd.f32 %v1936, %v1939
        %v1942 = vadd.f32 %v1937, %v1939
        %1943 = vrot.lane.b32.xlu0 %v1800, 64
        %v1944 = vpop.permute.xlu0 %1943
        %1945 = vrot.lane.b32.xlu0 %v1801, 64
        %v1946 = vpop.permute.xlu0 %1945
        %1947 = vrot.lane.b32.xlu0 %v1802, 64
        %v1948 = vpop.permute.xlu0 %1947
        %1949 = vrot.lane.b32.xlu0 %v1803, 64
        %v1950 = vpop.permute.xlu0 %1949
        %1955 = vrot.lane.b32.xlu0 %v1840, 96
        %v1956 = vpop.permute.xlu0 %1955
        %v1959 = vsel %vm324, %v1941, 0
        %v1962 = vsel %vm324, %v1942, 0
        %1964 = vmatpush.msra.mxu0 0.0
        %1965 = vmatpush.msra.mxu0 0.0
        %1966 = vmatpush.msra.mxu0 0.0
        %1967 = vmatpush.msra.mxu0 0.0
        %1968 = vmatpush.msra.mxu0 0.0
        %1969 = vmatpush.msra.mxu0 0.0
        %1970 = vmatpush.msra.mxu0 0.0
        %1971 = vmatpush.msra.mxu0 0.0
        %1972 = vmatpush.msra.mxu0 0.0
        %1973 = vmatpush.msra.mxu0 0.0
        %1974 = vmatpush.msra.mxu0 0.0
        %1975 = vmatpush.msra.mxu0 0.0
        %1976 = vmatpush.msra.mxu0 %v1950
        %1977 = vmatpush.msra.mxu0 %v1948
        %1978 = vmatpush.msra.mxu0 %v1946
        %1979 = vmatpush.msra.mxu0 %v1944
        %1980 = vmatmul.f32.gmra.mxu0 %v1959
        %v1981 = vpop.f32.mrf.mxu0
        %v1982 = vadd.f32 %v1956, %v1981
        %1983 = vmatmul.f32.gmra.mxu0 %v1962
        %v1984 = vpop.f32.mrf.mxu0
        %v1985 = vadd.f32 %v1956, %v1984
        %1986 = vdwg.mxu0
        %v1987 = vmax.f32 %v1982, 0.0
        %v1988 = vmax.f32 %v1985, 0.0
        %v1989 = vld [vmem:[%s4] sm:$0xff]
        %v1990 = vld [vmem:[%s4 + $0x8] sm:$0xff]
        %v1991 = vld [vmem:[%s4 + $0x10] sm:$0xff]
        %v1992 = vld [vmem:[%s4 + $0x18] sm:$0xff]
        %v1993 = vld [vmem:[%s4 + $0x20] sm:$0xff]
        %v1994 = vld [vmem:[%s4 + $0x28] sm:$0xff]
        %v1995 = vld [vmem:[%s4 + $0x30] sm:$0xff]
        %v1996 = vld [vmem:[%s4 + $0x38] sm:$0xff]
        %1997 = vrot.lane.b32.xlu0 %v1840, 32
        %v1998 = vpop.permute.xlu0 %1997
        %vm2000 = vcmask 523264
        %v2002 = vsel %vm2000, %v1987, 0
        %v2005 = vsel %vm2000, %v1988, 0
        %2007 = vmatpush.msra.mxu0 0.0
        %2008 = vmatpush.msra.mxu0 0.0
        %2009 = vmatpush.msra.mxu0 0.0
        %2010 = vmatpush.msra.mxu0 0.0
        %2011 = vmatpush.msra.mxu0 0.0
        %2012 = vmatpush.msra.mxu0 0.0
        %2013 = vmatpush.msra.mxu0 0.0
        %2014 = vmatpush.msra.mxu0 0.0
        %2015 = vmatpush.msra.mxu0 %v1996
        %2016 = vmatpush.msra.mxu0 %v1995
        %2017 = vmatpush.msra.mxu0 %v1994
        %2018 = vmatpush.msra.mxu0 %v1993
        %2019 = vmatpush.msra.mxu0 %v1992
        %2020 = vmatpush.msra.mxu0 %v1991
        %2021 = vmatpush.msra.mxu0 %v1990
        %2022 = vmatpush.msra.mxu0 %v1989
        %2023 = vmatmul.f32.gmra.mxu0 %v2002
        %v2024 = vpop.f32.mrf.mxu0
        %v2025 = vadd.f32 %v1998, %v2024
        %2026 = vmatmul.f32.gmra.mxu0 %v2005
        %v2027 = vpop.f32.mrf.mxu0
        %v2028 = vadd.f32 %v1998, %v2027
        %2029 = vdwg.mxu0
        %2030 = vst.msk [vmem:[%s262] sm:$0xff] %vm387, %v2025
        %2031 = vst.msk [vmem:[%s262 + $0x8] sm:$0xff] %vm387, %v2028
        %s2032 = sand.u32 %s160, 1
        %s2033 = scalar_lea.sflag [#allocation4], %s2032
        %s2034 = sand.u32 %s160, 1
        %s2035 = smul.addr %s2034, 16
        %s2036 = scalar_lea.vmem [#allocation5], %s2035
        // Predicated region
        $region49: #{tpu_custom_call.1} parent=43 // pred_check
          %p2037 = pneg %p170
        $region50: #{tpu_custom_call.1} parent=43 // pred_check_branch
          %2039 = sbr.rel (%p2037) target = $region52
        $region51: #{tpu_custom_call.1} parent=43 // pred_region
          %s2040 = smul.u32 2, %s21
          %2042 = vsyncadd %s2033, 0
          %s2043 = smul.addr %s2040, 8
          %s2044 = scalar_lea.hbm %s6, %s2043
          %s2045 = sshll.u32 %s2036, 4
          %s2046 = int_to_ptr.vmem [resolvable:$true] %s2045
          %s2047 = sshll.u32 %s2044, 4
          %s2048 = int_to_ptr.hbm [resolvable:$true] %s2047
          %2053 = dma.vmem_to_hbm [thread:$0]  %s2046, 256, %s2048, %s2033, 128, 128, 8
        $region52: #{tpu_custom_call.1} parent=43 // pred_fallthru
          _
      $region44: #{tpu_custom_call.1} parent=5 // pred_fallthru
        _
      %p2054 = scmp.le.s32.totalorder 2, %s16
      // Predicated region
      $region53: #{tpu_custom_call.1} parent=5 // pred_check
        %p2055 = pneg %p2054
      $region54: #{tpu_custom_call.1} parent=5 // pred_check_branch
        %2057 = sbr.rel (%p2055) target = $region56
      $region55: #{tpu_custom_call.1} parent=5 // pred_region
        %s2058 = ssub.s32 %s16, 2
        // Predicated region
        $region57: #{tpu_custom_call.1} parent=55 // pred_check
          %p2059 = pneg %p176
        $region58: #{tpu_custom_call.1} parent=55 // pred_check_branch
          %2061 = sbr.rel (%p2059) target = $region60
        $region59: #{tpu_custom_call.1} parent=55 // pred_region
          %s2062 = sand.u32 %s161, 1
          %s2063 = scalar_lea.sflag [#allocation4], %s2062
          %s2064 = sand.u32 %s161, 1
          %s2065 = smul.addr %s2064, 16
          %s2066 = scalar_lea.vmem [#allocation5], %s2065
          %2068 = dma.done %s2063, 256
        $region60: #{tpu_custom_call.1} parent=55 // pred_fallthru
          _
      $region56: #{tpu_custom_call.1} parent=5 // pred_fallthru
        _
    $region6: #{tpu_custom_call.1} parent=1 // loop_footer
      %s20 = sadd.s32 1, %s16
    $region7: #{tpu_custom_call.1} parent=1 // loop_footer_branch
      %15 = sbr.rel target = $region3
    $region8: #{tpu_custom_call.1} parent=1 // loop_exit
      _
    %2069 = vsyncpa [#allocation3], 1
    %s2070 = scalar_lea.sflag [#allocation3], 1
    %2071 = vsyncpa %s2070, 1
    %2072 = vsyncpa [#allocation4], 1
    %s2073 = scalar_lea.sflag [#allocation4], 1
    %2074 = vsyncpa %s2073, 1

</llo_original>
